<compile_context>
chip_gen: v7x
topology: tpu7x:2x2x1
jax: 0.10.0
libtpu: 0.0.40
codegen_flags: <defaults>
</compile_context>

<pallas_src>
import functools

import jax
import jax.numpy as jnp
from jax.experimental import pallas as pl
from jax.experimental.pallas import tpu as pltpu


CFG = dict(vocab=100, max_pos=72, hidden=32, heads=4, layers=2,
           intermediate=64, num_labels=4, pad_idx=1, ln_eps=1e-5)

LABEL_PAD = 128          # classifier output padded to one full lane register
VEC_ROWS_PER_LAYER = 8   # packed bias / LayerNorm rows per transformer layer


# ---------------------------------------------------------------------------
# In-kernel math helpers
# ---------------------------------------------------------------------------
def _gelu_tanh(x):
    # tanh-approx GELU: the tanh executes in the otherwise-idle EUP slot.
    # TODO(synk): HF Longformer uses exact-erf GELU; tanh approx deviates ~1e-3.
    c = 0.7978845608028654      # sqrt(2/pi)
    return 0.5 * x * (1.0 + jnp.tanh(c * (x + 0.044715 * x * x * x)))


# ---------------------------------------------------------------------------
# The fused forward kernel: one grid step == one batch element
# ---------------------------------------------------------------------------
def _echr_kernel(x_ref, bias_ref, vec_ref, wa_ref, wb_ref, cls_w_ref, o_ref, *,
                 num_layers, heads, hidden, inter, ln_eps):
    H, I, nH = hidden, inter, heads
    D = H // nH

    x = x_ref[0].astype(jnp.float32)        # (S, H)   bf16 embeddings -> f32
    bias = bias_ref[0]                      # (1, S)   additive key mask, f32

    def vrow(r, n):                         # (1, n) row of the packed vec slab
        return vec_ref[r:r + 1, 0:n]

    def mm(a16, w16):                       # bf16 MXU inputs, f32 accumulation
        return jnp.dot(a16, w16, preferred_element_type=jnp.float32)

    def ln(v, g_row, b_row):
        mean = jnp.mean(v, axis=-1, keepdims=True)
        var = jnp.mean(jnp.square(v - mean), axis=-1, keepdims=True)
        return (v - mean) * jax.lax.rsqrt(var + ln_eps) * vrow(g_row, H) + vrow(b_row, H)

    x = ln(x, 0, 1)                         # embedding LayerNorm

    for l in range(num_layers):
        base = 2 + VEC_ROWS_PER_LAYER * l
        wa_l = wa_ref[l]                    # (H, 3H + H + I) bf16, resident
        wqkv = wa_l[:, 0:3 * H]             # (H, 3H)  q-part pre-scaled
        wo = wa_l[:, 3 * H:4 * H]           # (H, H)
        wi = wa_l[:, 4 * H:4 * H + I]       # (H, I)
        wf = wb_ref[l]                      # (I, H)   bf16

        # --- fused QKV projection: single 96-lane-wide matmul ---------------
        x16 = x.astype(jnp.bfloat16)
        qkv = mm(x16, wqkv) + vrow(base + 0, 3 * H)          # (S, 3H) f32
        qkv16 = qkv.astype(jnp.bfloat16)

        # --- per-head attention via static lane slices of the fused tile ----
        ctx_parts = []
        for h in range(nH):
            q_h = qkv16[:, h * D:(h + 1) * D]                 # (S, D)
            k_h = qkv16[:, H + h * D:H + (h + 1) * D]
            v_h = qkv16[:, 2 * H + h * D:2 * H + (h + 1) * D]
            s = jax.lax.dot_general(q_h, k_h, (((1,), (1,)), ((), ())),
                                    preferred_element_type=jnp.float32)   # (S, S)
            s = s + bias                                      # scale already folded
            s = s - jnp.max(s, axis=-1, keepdims=True)
            p = jnp.exp(s)
            p = p * pl.reciprocal(jnp.sum(p, axis=-1, keepdims=True), approx=True)
            ctx_parts.append(mm(p.astype(jnp.bfloat16), v_h))              # (S, D)
        ctx = jnp.concatenate(ctx_parts, axis=-1)                          # (S, H)

        # --- single unsplit output projection + residual + LN ---------------
        attn = mm(ctx.astype(jnp.bfloat16), wo) + vrow(base + 1, H)
        x = ln(x + attn, base + 2, base + 3)

        # --- feed-forward (tanh GELU) + residual + LN ------------------------
        x16 = x.astype(jnp.bfloat16)
        hmid = _gelu_tanh(mm(x16, wi) + vrow(base + 4, I))                 # (S, I)
        ffn = mm(hmid.astype(jnp.bfloat16), wf) + vrow(base + 5, H)
        x = ln(x + ffn, base + 6, base + 7)

    # --- classifier head (lane-dense 128-wide padded output; row 0 == [CLS])
    cls_row = 2 + VEC_ROWS_PER_LAYER * num_layers
    logits = mm(x.astype(jnp.bfloat16), cls_w_ref[...]) + vrow(cls_row, LABEL_PAD)
    o_ref[0] = logits.astype(o_ref.dtype)


# ---------------------------------------------------------------------------
# Parameters
# ---------------------------------------------------------------------------
def init_params(key, cfg=CFG):
    H, I = cfg["hidden"], cfg["intermediate"]
    keys = iter(jax.random.split(key, 8 + 10 * cfg["layers"]))

    def w(shape):
        return jax.random.normal(next(keys), shape, jnp.float32) * 0.02

    params = {
        "word_emb": w((cfg["vocab"], H)),
        "pos_emb": w((cfg["max_pos"], H)),
        "type_emb": w((1, H)),
        "emb_ln_g": jnp.ones((H,), jnp.float32),
        "emb_ln_b": jnp.zeros((H,), jnp.float32),
        "cls_w": w((H, cfg["num_labels"])),
        "cls_b": jnp.zeros((cfg["num_labels"],), jnp.float32),
        "layers": [],
    }
    for _ in range(cfg["layers"]):
        params["layers"].append({
            "wq": w((H, H)), "bq": jnp.zeros((H,), jnp.float32),
            "wk": w((H, H)), "bk": jnp.zeros((H,), jnp.float32),
            "wv": w((H, H)), "bv": jnp.zeros((H,), jnp.float32),
            "wo": w((H, H)), "bo": jnp.zeros((H,), jnp.float32),
            "ln1_g": jnp.ones((H,), jnp.float32), "ln1_b": jnp.zeros((H,), jnp.float32),
            "wi": w((H, I)), "bi": jnp.zeros((I,), jnp.float32),
            "wf": w((I, H)), "bf": jnp.zeros((H,), jnp.float32),
            "ln2_g": jnp.ones((H,), jnp.float32), "ln2_b": jnp.zeros((H,), jnp.float32),
        })
    return params


def pack_params(params, cfg=CFG):
    """One-time repack into 4 consolidated kernel operands (off the hot path)."""
    H, I, nH, L = cfg["hidden"], cfg["intermediate"], cfg["heads"], cfg["layers"]
    D = H // nH
    scale = 1.0 / float(D) ** 0.5
    NL = cfg["num_labels"]

    rows = 2 + VEC_ROWS_PER_LAYER * L + 1
    vecs = jnp.zeros((rows, LABEL_PAD), jnp.float32)
    vecs = vecs.at[0, :H].set(params["emb_ln_g"])
    vecs = vecs.at[1, :H].set(params["emb_ln_b"])

    wa, wb = [], []
    for l, lp in enumerate(params["layers"]):
        base = 2 + VEC_ROWS_PER_LAYER * l
        # 1/sqrt(D) folded into wq AND bq at pack time (no per-call scale op).
        bqkv = jnp.concatenate([lp["bq"] * scale, lp["bk"], lp["bv"]])
        vecs = vecs.at[base + 0, :3 * H].set(bqkv)
        vecs = vecs.at[base + 1, :H].set(lp["bo"])
        vecs = vecs.at[base + 2, :H].set(lp["ln1_g"])
        vecs = vecs.at[base + 3, :H].set(lp["ln1_b"])
        vecs = vecs.at[base + 4, :I].set(lp["bi"])
        vecs = vecs.at[base + 5, :H].set(lp["bf"])
        vecs = vecs.at[base + 6, :H].set(lp["ln2_g"])
        vecs = vecs.at[base + 7, :H].set(lp["ln2_b"])

        wqkv = jnp.concatenate([lp["wq"] * scale, lp["wk"], lp["wv"]], axis=1)  # (H, 3H)
        wa.append(jnp.concatenate([wqkv, lp["wo"], lp["wi"]], axis=1))          # (H, 4H+I)
        wb.append(lp["wf"])                                                     # (I, H)

    vecs = vecs.at[2 + VEC_ROWS_PER_LAYER * L, :NL].set(params["cls_b"])

    cls_w = jnp.zeros((H, LABEL_PAD), jnp.float32).at[:, :NL].set(params["cls_w"])

    return {"word_emb": params["word_emb"], "pos_emb": params["pos_emb"],
            "type_emb": params["type_emb"],
            "vecs": vecs,                                    # (rows, 128) f32
            "wA": jnp.stack(wa).astype(jnp.bfloat16),        # (L, H, 4H+I) bf16
            "wB": jnp.stack(wb).astype(jnp.bfloat16),        # (L, I, H)    bf16
            "cls_w": cls_w.astype(jnp.bfloat16)}             # (H, 128)     bf16


# ---------------------------------------------------------------------------
# Forward pass: embedding gathers (JAX glue) + one fused pallas_call
# ---------------------------------------------------------------------------
def echr_forward(packed, input_ids, attention_mask, cfg=CFG):
    B, S = input_ids.shape
    H, I = cfg["hidden"], cfg["intermediate"]
    nH, L = cfg["heads"], cfg["layers"]

    # Longformer-style position ids: pads keep pad_idx, real tokens count up.
    tok_mask = (input_ids != cfg["pad_idx"]).astype(jnp.int32)
    pos_ids = jnp.cumsum(tok_mask, axis=1) * tok_mask + cfg["pad_idx"]
    x_emb = (packed["word_emb"][input_ids]
             + packed["pos_emb"][pos_ids]
             + packed["type_emb"][0][None, None, :]).astype(jnp.bfloat16)   # (B, S, H)

    # additive attention-mask bias: 0 keep, -1e9 for padded keys
    bias = ((attention_mask.astype(jnp.float32) - 1.0) * 1e9)[:, None, :]   # (B, 1, S)

    vecs, wa, wb, cls_w = packed["vecs"], packed["wA"], packed["wB"], packed["cls_w"]

    def resident(a):   # weights: constant index_map -> stay resident in VMEM
        nd = a.ndim
        return pl.BlockSpec(a.shape, lambda b, nd=nd: (0,) * nd)

    kernel = functools.partial(_echr_kernel, num_layers=L, heads=nH,
                               hidden=H, inter=I, ln_eps=cfg["ln_eps"])

    out = pl.pallas_call(
        kernel,
        out_shape=jax.ShapeDtypeStruct((B, S, LABEL_PAD), jnp.float32),
        grid=(B,),
        in_specs=[pl.BlockSpec((1, S, H), lambda b: (b, 0, 0)),
                  pl.BlockSpec((1, 1, S), lambda b: (b, 0, 0)),
                  resident(vecs), resident(wa), resident(wb), resident(cls_w)],
        out_specs=pl.BlockSpec((1, S, LABEL_PAD), lambda b: (b, 0, 0)),
        compiler_params=pltpu.CompilerParams(dimension_semantics=("parallel",)),
    )(x_emb, bias, vecs, wa, wb, cls_w)

    return out[:, 0, :cfg["num_labels"]]   # logits (B, num_labels)


# ---------------------------------------------------------------------------
if __name__ == "__main__":
    B, S = 2, 8
    root = jax.random.PRNGKey(0)
    k_param, k_ids = jax.random.split(root)

    params = init_params(k_param)
    packed = pack_params(params)

    # token ids avoid the padding index (1); batch row 1 has 2 padded keys
    input_ids = jax.random.randint(k_ids, (B, S), 2, CFG["vocab"], dtype=jnp.int32)
    attention_mask = jnp.ones((B, S), jnp.float32).at[1, -2:].set(0.0)

    fwd = jax.jit(echr_forward)
    logits = jax.block_until_ready(fwd(packed, input_ids, attention_mask))

    assert logits.shape == (B, CFG["num_labels"]), logits.shape
    assert bool(jnp.all(jnp.isfinite(logits)))
    print("KERNEL_OK")
</pallas_src>

<mosaic_0001>
module attributes {stable_mosaic.version = 11 : i64} {
  func.func @_echr_kernel(%arg0: i32, %arg1: memref<1x8x32xbf16, #tpu.memory_space<vmem>>, %arg2: memref<1x1x8xf32, #tpu.memory_space<vmem>>, %arg3: memref<19x128xf32, #tpu.memory_space<vmem>>, %arg4: memref<2x32x192xbf16, #tpu.memory_space<vmem>>, %arg5: memref<2x64x32xbf16, #tpu.memory_space<vmem>>, %arg6: memref<32x128xbf16, #tpu.memory_space<vmem>>, %arg7: memref<1x8x128xf32, #tpu.memory_space<vmem>>) attributes {dimension_semantics = [#tpu.dimension_semantics<parallel>], iteration_bounds = array<i64: 2>, scalar_prefetch = 0 : i64, scratch_operands = 0 : i64, tpu.core_type = #tpu.core_type<tc>, window_params = [{transform_indices = @transform_0, window_bounds = array<i64: 1, 8, 32>}, {transform_indices = @transform_1, window_bounds = array<i64: 1, 1, 8>}, {pipeline_mode = #tpu.pipeline_mode<synchronous>, transform_indices = @transform_2, window_bounds = array<i64: 19, 128>}, {pipeline_mode = #tpu.pipeline_mode<synchronous>, transform_indices = @transform_3, window_bounds = array<i64: 2, 32, 192>}, {pipeline_mode = #tpu.pipeline_mode<synchronous>, transform_indices = @transform_4, window_bounds = array<i64: 2, 64, 32>}, {pipeline_mode = #tpu.pipeline_mode<synchronous>, transform_indices = @transform_5, window_bounds = array<i64: 32, 128>}, {transform_indices = @transform_6, window_bounds = array<i64: 1, 8, 128>}]} {
    %c0 = arith.constant 0 : index
    %c0_0 = arith.constant 0 : index
    %c0_1 = arith.constant 0 : index
    %0 = vector.load %arg1[%c0, %c0_0, %c0_1] : memref<1x8x32xbf16, #tpu.memory_space<vmem>>, vector<1x8x32xbf16>
    %1 = vector.shape_cast %0 : vector<1x8x32xbf16> to vector<8x32xbf16>
    %2 = arith.extf %1 : vector<8x32xbf16> to vector<8x32xf32>
    %c0_2 = arith.constant 0 : index
    %c0_3 = arith.constant 0 : index
    %c0_4 = arith.constant 0 : index
    %3 = vector.load %arg2[%c0_2, %c0_3, %c0_4] : memref<1x1x8xf32, #tpu.memory_space<vmem>>, vector<1x1x8xf32>
    %4 = vector.shape_cast %3 : vector<1x1x8xf32> to vector<1x8xf32>
    %cst = arith.constant dense<0.000000e+00> : vector<8xf32>
    %5 = vector.multi_reduction <add>, %2, %cst [1] : vector<8x32xf32> to vector<8xf32>
    %6 = vector.shape_cast %5 : vector<8xf32> to vector<8x1xf32>
    %cst_5 = arith.constant 3.200000e+01 : f32
    %7 = vector.broadcast %cst_5 : f32 to vector<8x1xf32>
    %8 = arith.divf %6, %7 : vector<8x1xf32>
    %9 = vector.broadcast %8 : vector<8x1xf32> to vector<8x32xf32>
    %10 = arith.subf %2, %9 : vector<8x32xf32>
    %11 = arith.mulf %10, %10 : vector<8x32xf32>
    %cst_6 = arith.constant dense<0.000000e+00> : vector<8xf32>
    %12 = vector.multi_reduction <add>, %11, %cst_6 [1] : vector<8x32xf32> to vector<8xf32>
    %13 = vector.shape_cast %12 : vector<8xf32> to vector<8x1xf32>
    %cst_7 = arith.constant 3.200000e+01 : f32
    %14 = vector.broadcast %cst_7 : f32 to vector<8x1xf32>
    %15 = arith.divf %13, %14 : vector<8x1xf32>
    %16 = vector.broadcast %8 : vector<8x1xf32> to vector<8x32xf32>
    %17 = arith.subf %2, %16 : vector<8x32xf32>
    %cst_8 = arith.constant 9.99999974E-6 : f32
    %18 = vector.broadcast %cst_8 : f32 to vector<8x1xf32>
    %19 = arith.addf %15, %18 : vector<8x1xf32>
    %20 = math.rsqrt %19 : vector<8x1xf32>
    %21 = vector.broadcast %20 : vector<8x1xf32> to vector<8x32xf32>
    %22 = arith.mulf %17, %21 : vector<8x32xf32>
    %c0_9 = arith.constant 0 : index
    %c0_10 = arith.constant 0 : index
    %23 = vector.load %arg3[%c0_9, %c0_10] : memref<19x128xf32, #tpu.memory_space<vmem>>, vector<1x32xf32>
    %24 = vector.broadcast %23 : vector<1x32xf32> to vector<8x32xf32>
    %25 = arith.mulf %22, %24 : vector<8x32xf32>
    %c1 = arith.constant 1 : index
    %c0_11 = arith.constant 0 : index
    %26 = vector.load %arg3[%c1, %c0_11] : memref<19x128xf32, #tpu.memory_space<vmem>>, vector<1x32xf32>
    %27 = vector.broadcast %26 : vector<1x32xf32> to vector<8x32xf32>
    %28 = arith.addf %25, %27 : vector<8x32xf32>
    %c0_12 = arith.constant 0 : index
    %c0_13 = arith.constant 0 : index
    %c0_14 = arith.constant 0 : index
    %29 = vector.load %arg4[%c0_12, %c0_13, %c0_14] : memref<2x32x192xbf16, #tpu.memory_space<vmem>>, vector<1x32x192xbf16>
    %30 = vector.shape_cast %29 : vector<1x32x192xbf16> to vector<32x192xbf16>
    %31 = vector.extract_strided_slice %30 {offsets = [0, 0], sizes = [32, 96], strides = [1, 1]} : vector<32x192xbf16> to vector<32x96xbf16>
    %32 = vector.extract_strided_slice %30 {offsets = [0, 96], sizes = [32, 32], strides = [1, 1]} : vector<32x192xbf16> to vector<32x32xbf16>
    %33 = vector.extract_strided_slice %30 {offsets = [0, 128], sizes = [32, 64], strides = [1, 1]} : vector<32x192xbf16> to vector<32x64xbf16>
    %c0_15 = arith.constant 0 : index
    %c0_16 = arith.constant 0 : index
    %c0_17 = arith.constant 0 : index
    %34 = vector.load %arg5[%c0_15, %c0_16, %c0_17] : memref<2x64x32xbf16, #tpu.memory_space<vmem>>, vector<1x64x32xbf16>
    %35 = vector.shape_cast %34 : vector<1x64x32xbf16> to vector<64x32xbf16>
    %36 = arith.truncf %28 : vector<8x32xf32> to vector<8x32xbf16>
    %cst_18 = arith.constant dense<0.000000e+00> : vector<8x96xf32>
    %37 = tpu.matmul %36, %31, %cst_18 {dimension_numbers = #tpu.dot_dimension_numbers<[1], [0], [0], [1], [0, 0, 1, 1], [], []>} : vector<8x32xbf16>, vector<32x96xbf16>, vector<8x96xf32> -> vector<8x96xf32>
    %c2 = arith.constant 2 : index
    %c0_19 = arith.constant 0 : index
    %38 = vector.load %arg3[%c2, %c0_19] : memref<19x128xf32, #tpu.memory_space<vmem>>, vector<1x96xf32>
    %39 = vector.broadcast %38 : vector<1x96xf32> to vector<8x96xf32>
    %40 = arith.addf %37, %39 : vector<8x96xf32>
    %41 = arith.truncf %40 : vector<8x96xf32> to vector<8x96xbf16>
    %42 = vector.extract_strided_slice %41 {offsets = [0, 0], sizes = [8, 8], strides = [1, 1]} : vector<8x96xbf16> to vector<8x8xbf16>
    %43 = vector.extract_strided_slice %41 {offsets = [0, 32], sizes = [8, 8], strides = [1, 1]} : vector<8x96xbf16> to vector<8x8xbf16>
    %44 = vector.extract_strided_slice %41 {offsets = [0, 64], sizes = [8, 8], strides = [1, 1]} : vector<8x96xbf16> to vector<8x8xbf16>
    %cst_20 = arith.constant dense<0.000000e+00> : vector<8x8xf32>
    %45 = tpu.matmul %42, %43, %cst_20 {dimension_numbers = #tpu.dot_dimension_numbers<[1], [1], [0], [0], [0, 0, 1, 0], [], []>} : vector<8x8xbf16>, vector<8x8xbf16>, vector<8x8xf32> -> vector<8x8xf32>
    %46 = vector.broadcast %4 : vector<1x8xf32> to vector<8x8xf32>
    %47 = arith.addf %45, %46 : vector<8x8xf32>
    %cst_21 = arith.constant dense<0xFF800000> : vector<8xf32>
    %48 = vector.multi_reduction <maximumf>, %47, %cst_21 [1] : vector<8x8xf32> to vector<8xf32>
    %49 = vector.shape_cast %48 : vector<8xf32> to vector<8x1xf32>
    %50 = vector.broadcast %49 : vector<8x1xf32> to vector<8x8xf32>
    %51 = arith.subf %47, %50 : vector<8x8xf32>
    %52 = math.exp %51 : vector<8x8xf32>
    %cst_22 = arith.constant dense<0.000000e+00> : vector<8xf32>
    %53 = vector.multi_reduction <add>, %52, %cst_22 [1] : vector<8x8xf32> to vector<8xf32>
    %54 = vector.shape_cast %53 : vector<8xf32> to vector<8x1xf32>
    %55 = tpu.reciprocal %54 {approx = true} : vector<8x1xf32> -> vector<8x1xf32>
    %56 = vector.broadcast %55 : vector<8x1xf32> to vector<8x8xf32>
    %57 = arith.mulf %52, %56 : vector<8x8xf32>
    %58 = arith.truncf %57 : vector<8x8xf32> to vector<8x8xbf16>
    %cst_23 = arith.constant dense<0.000000e+00> : vector<8x8xf32>
    %59 = tpu.matmul %58, %44, %cst_23 {dimension_numbers = #tpu.dot_dimension_numbers<[1], [0], [0], [1], [0, 0, 1, 1], [], []>} : vector<8x8xbf16>, vector<8x8xbf16>, vector<8x8xf32> -> vector<8x8xf32>
    %60 = vector.extract_strided_slice %41 {offsets = [0, 8], sizes = [8, 8], strides = [1, 1]} : vector<8x96xbf16> to vector<8x8xbf16>
    %61 = vector.extract_strided_slice %41 {offsets = [0, 40], sizes = [8, 8], strides = [1, 1]} : vector<8x96xbf16> to vector<8x8xbf16>
    %62 = vector.extract_strided_slice %41 {offsets = [0, 72], sizes = [8, 8], strides = [1, 1]} : vector<8x96xbf16> to vector<8x8xbf16>
    %cst_24 = arith.constant dense<0.000000e+00> : vector<8x8xf32>
    %63 = tpu.matmul %60, %61, %cst_24 {dimension_numbers = #tpu.dot_dimension_numbers<[1], [1], [0], [0], [0, 0, 1, 0], [], []>} : vector<8x8xbf16>, vector<8x8xbf16>, vector<8x8xf32> -> vector<8x8xf32>
    %64 = vector.broadcast %4 : vector<1x8xf32> to vector<8x8xf32>
    %65 = arith.addf %63, %64 : vector<8x8xf32>
    %cst_25 = arith.constant dense<0xFF800000> : vector<8xf32>
    %66 = vector.multi_reduction <maximumf>, %65, %cst_25 [1] : vector<8x8xf32> to vector<8xf32>
    %67 = vector.shape_cast %66 : vector<8xf32> to vector<8x1xf32>
    %68 = vector.broadcast %67 : vector<8x1xf32> to vector<8x8xf32>
    %69 = arith.subf %65, %68 : vector<8x8xf32>
    %70 = math.exp %69 : vector<8x8xf32>
    %cst_26 = arith.constant dense<0.000000e+00> : vector<8xf32>
    %71 = vector.multi_reduction <add>, %70, %cst_26 [1] : vector<8x8xf32> to vector<8xf32>
    %72 = vector.shape_cast %71 : vector<8xf32> to vector<8x1xf32>
    %73 = tpu.reciprocal %72 {approx = true} : vector<8x1xf32> -> vector<8x1xf32>
    %74 = vector.broadcast %73 : vector<8x1xf32> to vector<8x8xf32>
    %75 = arith.mulf %70, %74 : vector<8x8xf32>
    %76 = arith.truncf %75 : vector<8x8xf32> to vector<8x8xbf16>
    %cst_27 = arith.constant dense<0.000000e+00> : vector<8x8xf32>
    %77 = tpu.matmul %76, %62, %cst_27 {dimension_numbers = #tpu.dot_dimension_numbers<[1], [0], [0], [1], [0, 0, 1, 1], [], []>} : vector<8x8xbf16>, vector<8x8xbf16>, vector<8x8xf32> -> vector<8x8xf32>
    %78 = vector.extract_strided_slice %41 {offsets = [0, 16], sizes = [8, 8], strides = [1, 1]} : vector<8x96xbf16> to vector<8x8xbf16>
    %79 = vector.extract_strided_slice %41 {offsets = [0, 48], sizes = [8, 8], strides = [1, 1]} : vector<8x96xbf16> to vector<8x8xbf16>
    %80 = vector.extract_strided_slice %41 {offsets = [0, 80], sizes = [8, 8], strides = [1, 1]} : vector<8x96xbf16> to vector<8x8xbf16>
    %cst_28 = arith.constant dense<0.000000e+00> : vector<8x8xf32>
    %81 = tpu.matmul %78, %79, %cst_28 {dimension_numbers = #tpu.dot_dimension_numbers<[1], [1], [0], [0], [0, 0, 1, 0], [], []>} : vector<8x8xbf16>, vector<8x8xbf16>, vector<8x8xf32> -> vector<8x8xf32>
    %82 = vector.broadcast %4 : vector<1x8xf32> to vector<8x8xf32>
    %83 = arith.addf %81, %82 : vector<8x8xf32>
    %cst_29 = arith.constant dense<0xFF800000> : vector<8xf32>
    %84 = vector.multi_reduction <maximumf>, %83, %cst_29 [1] : vector<8x8xf32> to vector<8xf32>
    %85 = vector.shape_cast %84 : vector<8xf32> to vector<8x1xf32>
    %86 = vector.broadcast %85 : vector<8x1xf32> to vector<8x8xf32>
    %87 = arith.subf %83, %86 : vector<8x8xf32>
    %88 = math.exp %87 : vector<8x8xf32>
    %cst_30 = arith.constant dense<0.000000e+00> : vector<8xf32>
    %89 = vector.multi_reduction <add>, %88, %cst_30 [1] : vector<8x8xf32> to vector<8xf32>
    %90 = vector.shape_cast %89 : vector<8xf32> to vector<8x1xf32>
    %91 = tpu.reciprocal %90 {approx = true} : vector<8x1xf32> -> vector<8x1xf32>
    %92 = vector.broadcast %91 : vector<8x1xf32> to vector<8x8xf32>
    %93 = arith.mulf %88, %92 : vector<8x8xf32>
    %94 = arith.truncf %93 : vector<8x8xf32> to vector<8x8xbf16>
    %cst_31 = arith.constant dense<0.000000e+00> : vector<8x8xf32>
    %95 = tpu.matmul %94, %80, %cst_31 {dimension_numbers = #tpu.dot_dimension_numbers<[1], [0], [0], [1], [0, 0, 1, 1], [], []>} : vector<8x8xbf16>, vector<8x8xbf16>, vector<8x8xf32> -> vector<8x8xf32>
    %96 = vector.extract_strided_slice %41 {offsets = [0, 24], sizes = [8, 8], strides = [1, 1]} : vector<8x96xbf16> to vector<8x8xbf16>
    %97 = vector.extract_strided_slice %41 {offsets = [0, 56], sizes = [8, 8], strides = [1, 1]} : vector<8x96xbf16> to vector<8x8xbf16>
    %98 = vector.extract_strided_slice %41 {offsets = [0, 88], sizes = [8, 8], strides = [1, 1]} : vector<8x96xbf16> to vector<8x8xbf16>
    %cst_32 = arith.constant dense<0.000000e+00> : vector<8x8xf32>
    %99 = tpu.matmul %96, %97, %cst_32 {dimension_numbers = #tpu.dot_dimension_numbers<[1], [1], [0], [0], [0, 0, 1, 0], [], []>} : vector<8x8xbf16>, vector<8x8xbf16>, vector<8x8xf32> -> vector<8x8xf32>
    %100 = vector.broadcast %4 : vector<1x8xf32> to vector<8x8xf32>
    %101 = arith.addf %99, %100 : vector<8x8xf32>
    %cst_33 = arith.constant dense<0xFF800000> : vector<8xf32>
    %102 = vector.multi_reduction <maximumf>, %101, %cst_33 [1] : vector<8x8xf32> to vector<8xf32>
    %103 = vector.shape_cast %102 : vector<8xf32> to vector<8x1xf32>
    %104 = vector.broadcast %103 : vector<8x1xf32> to vector<8x8xf32>
    %105 = arith.subf %101, %104 : vector<8x8xf32>
    %106 = math.exp %105 : vector<8x8xf32>
    %cst_34 = arith.constant dense<0.000000e+00> : vector<8xf32>
    %107 = vector.multi_reduction <add>, %106, %cst_34 [1] : vector<8x8xf32> to vector<8xf32>
    %108 = vector.shape_cast %107 : vector<8xf32> to vector<8x1xf32>
    %109 = tpu.reciprocal %108 {approx = true} : vector<8x1xf32> -> vector<8x1xf32>
    %110 = vector.broadcast %109 : vector<8x1xf32> to vector<8x8xf32>
    %111 = arith.mulf %106, %110 : vector<8x8xf32>
    %112 = arith.truncf %111 : vector<8x8xf32> to vector<8x8xbf16>
    %cst_35 = arith.constant dense<0.000000e+00> : vector<8x8xf32>
    %113 = tpu.matmul %112, %98, %cst_35 {dimension_numbers = #tpu.dot_dimension_numbers<[1], [0], [0], [1], [0, 0, 1, 1], [], []>} : vector<8x8xbf16>, vector<8x8xbf16>, vector<8x8xf32> -> vector<8x8xf32>
    %114 = tpu.concatenate %59, %77, %95, %113 in 1 : vector<8x8xf32>, vector<8x8xf32>, vector<8x8xf32>, vector<8x8xf32> -> vector<8x32xf32>
    %115 = arith.truncf %114 : vector<8x32xf32> to vector<8x32xbf16>
    %cst_36 = arith.constant dense<0.000000e+00> : vector<8x32xf32>
    %116 = tpu.matmul %115, %32, %cst_36 {dimension_numbers = #tpu.dot_dimension_numbers<[1], [0], [0], [1], [0, 0, 1, 1], [], []>} : vector<8x32xbf16>, vector<32x32xbf16>, vector<8x32xf32> -> vector<8x32xf32>
    %c3 = arith.constant 3 : index
    %c0_37 = arith.constant 0 : index
    %117 = vector.load %arg3[%c3, %c0_37] : memref<19x128xf32, #tpu.memory_space<vmem>>, vector<1x32xf32>
    %118 = vector.broadcast %117 : vector<1x32xf32> to vector<8x32xf32>
    %119 = arith.addf %116, %118 : vector<8x32xf32>
    %120 = arith.addf %28, %119 : vector<8x32xf32>
    %cst_38 = arith.constant dense<0.000000e+00> : vector<8xf32>
    %121 = vector.multi_reduction <add>, %120, %cst_38 [1] : vector<8x32xf32> to vector<8xf32>
    %122 = vector.shape_cast %121 : vector<8xf32> to vector<8x1xf32>
    %cst_39 = arith.constant 3.200000e+01 : f32
    %123 = vector.broadcast %cst_39 : f32 to vector<8x1xf32>
    %124 = arith.divf %122, %123 : vector<8x1xf32>
    %125 = vector.broadcast %124 : vector<8x1xf32> to vector<8x32xf32>
    %126 = arith.subf %120, %125 : vector<8x32xf32>
    %127 = arith.mulf %126, %126 : vector<8x32xf32>
    %cst_40 = arith.constant dense<0.000000e+00> : vector<8xf32>
    %128 = vector.multi_reduction <add>, %127, %cst_40 [1] : vector<8x32xf32> to vector<8xf32>
    %129 = vector.shape_cast %128 : vector<8xf32> to vector<8x1xf32>
    %cst_41 = arith.constant 3.200000e+01 : f32
    %130 = vector.broadcast %cst_41 : f32 to vector<8x1xf32>
    %131 = arith.divf %129, %130 : vector<8x1xf32>
    %132 = vector.broadcast %124 : vector<8x1xf32> to vector<8x32xf32>
    %133 = arith.subf %120, %132 : vector<8x32xf32>
    %cst_42 = arith.constant 9.99999974E-6 : f32
    %134 = vector.broadcast %cst_42 : f32 to vector<8x1xf32>
    %135 = arith.addf %131, %134 : vector<8x1xf32>
    %136 = math.rsqrt %135 : vector<8x1xf32>
    %137 = vector.broadcast %136 : vector<8x1xf32> to vector<8x32xf32>
    %138 = arith.mulf %133, %137 : vector<8x32xf32>
    %c4 = arith.constant 4 : index
    %c0_43 = arith.constant 0 : index
    %139 = vector.load %arg3[%c4, %c0_43] : memref<19x128xf32, #tpu.memory_space<vmem>>, vector<1x32xf32>
    %140 = vector.broadcast %139 : vector<1x32xf32> to vector<8x32xf32>
    %141 = arith.mulf %138, %140 : vector<8x32xf32>
    %c5 = arith.constant 5 : index
    %c0_44 = arith.constant 0 : index
    %142 = vector.load %arg3[%c5, %c0_44] : memref<19x128xf32, #tpu.memory_space<vmem>>, vector<1x32xf32>
    %143 = vector.broadcast %142 : vector<1x32xf32> to vector<8x32xf32>
    %144 = arith.addf %141, %143 : vector<8x32xf32>
    %145 = arith.truncf %144 : vector<8x32xf32> to vector<8x32xbf16>
    %cst_45 = arith.constant dense<0.000000e+00> : vector<8x64xf32>
    %146 = tpu.matmul %145, %33, %cst_45 {dimension_numbers = #tpu.dot_dimension_numbers<[1], [0], [0], [1], [0, 0, 1, 1], [], []>} : vector<8x32xbf16>, vector<32x64xbf16>, vector<8x64xf32> -> vector<8x64xf32>
    %c6 = arith.constant 6 : index
    %c0_46 = arith.constant 0 : index
    %147 = vector.load %arg3[%c6, %c0_46] : memref<19x128xf32, #tpu.memory_space<vmem>>, vector<1x64xf32>
    %148 = vector.broadcast %147 : vector<1x64xf32> to vector<8x64xf32>
    %149 = arith.addf %146, %148 : vector<8x64xf32>
    %cst_47 = arith.constant 5.000000e-01 : f32
    %150 = vector.broadcast %cst_47 : f32 to vector<8x64xf32>
    %151 = arith.mulf %150, %149 : vector<8x64xf32>
    %cst_48 = arith.constant 4.471500e-02 : f32
    %152 = vector.broadcast %cst_48 : f32 to vector<8x64xf32>
    %153 = arith.mulf %152, %149 : vector<8x64xf32>
    %154 = arith.mulf %153, %149 : vector<8x64xf32>
    %155 = arith.mulf %154, %149 : vector<8x64xf32>
    %156 = arith.addf %149, %155 : vector<8x64xf32>
    %cst_49 = arith.constant 0.797884583 : f32
    %157 = vector.broadcast %cst_49 : f32 to vector<8x64xf32>
    %158 = arith.mulf %157, %156 : vector<8x64xf32>
    %159 = math.tanh %158 : vector<8x64xf32>
    %cst_50 = arith.constant 1.000000e+00 : f32
    %160 = vector.broadcast %cst_50 : f32 to vector<8x64xf32>
    %161 = arith.addf %160, %159 : vector<8x64xf32>
    %162 = arith.mulf %151, %161 : vector<8x64xf32>
    %163 = arith.truncf %162 : vector<8x64xf32> to vector<8x64xbf16>
    %cst_51 = arith.constant dense<0.000000e+00> : vector<8x32xf32>
    %164 = tpu.matmul %163, %35, %cst_51 {dimension_numbers = #tpu.dot_dimension_numbers<[1], [0], [0], [1], [0, 0, 1, 1], [], []>} : vector<8x64xbf16>, vector<64x32xbf16>, vector<8x32xf32> -> vector<8x32xf32>
    %c7 = arith.constant 7 : index
    %c0_52 = arith.constant 0 : index
    %165 = vector.load %arg3[%c7, %c0_52] : memref<19x128xf32, #tpu.memory_space<vmem>>, vector<1x32xf32>
    %166 = vector.broadcast %165 : vector<1x32xf32> to vector<8x32xf32>
    %167 = arith.addf %164, %166 : vector<8x32xf32>
    %168 = arith.addf %144, %167 : vector<8x32xf32>
    %cst_53 = arith.constant dense<0.000000e+00> : vector<8xf32>
    %169 = vector.multi_reduction <add>, %168, %cst_53 [1] : vector<8x32xf32> to vector<8xf32>
    %170 = vector.shape_cast %169 : vector<8xf32> to vector<8x1xf32>
    %cst_54 = arith.constant 3.200000e+01 : f32
    %171 = vector.broadcast %cst_54 : f32 to vector<8x1xf32>
    %172 = arith.divf %170, %171 : vector<8x1xf32>
    %173 = vector.broadcast %172 : vector<8x1xf32> to vector<8x32xf32>
    %174 = arith.subf %168, %173 : vector<8x32xf32>
    %175 = arith.mulf %174, %174 : vector<8x32xf32>
    %cst_55 = arith.constant dense<0.000000e+00> : vector<8xf32>
    %176 = vector.multi_reduction <add>, %175, %cst_55 [1] : vector<8x32xf32> to vector<8xf32>
    %177 = vector.shape_cast %176 : vector<8xf32> to vector<8x1xf32>
    %cst_56 = arith.constant 3.200000e+01 : f32
    %178 = vector.broadcast %cst_56 : f32 to vector<8x1xf32>
    %179 = arith.divf %177, %178 : vector<8x1xf32>
    %180 = vector.broadcast %172 : vector<8x1xf32> to vector<8x32xf32>
    %181 = arith.subf %168, %180 : vector<8x32xf32>
    %cst_57 = arith.constant 9.99999974E-6 : f32
    %182 = vector.broadcast %cst_57 : f32 to vector<8x1xf32>
    %183 = arith.addf %179, %182 : vector<8x1xf32>
    %184 = math.rsqrt %183 : vector<8x1xf32>
    %185 = vector.broadcast %184 : vector<8x1xf32> to vector<8x32xf32>
    %186 = arith.mulf %181, %185 : vector<8x32xf32>
    %c8 = arith.constant 8 : index
    %c0_58 = arith.constant 0 : index
    %187 = vector.load %arg3[%c8, %c0_58] : memref<19x128xf32, #tpu.memory_space<vmem>>, vector<1x32xf32>
    %188 = vector.broadcast %187 : vector<1x32xf32> to vector<8x32xf32>
    %189 = arith.mulf %186, %188 : vector<8x32xf32>
    %c9 = arith.constant 9 : index
    %c0_59 = arith.constant 0 : index
    %190 = vector.load %arg3[%c9, %c0_59] : memref<19x128xf32, #tpu.memory_space<vmem>>, vector<1x32xf32>
    %191 = vector.broadcast %190 : vector<1x32xf32> to vector<8x32xf32>
    %192 = arith.addf %189, %191 : vector<8x32xf32>
    %c1_60 = arith.constant 1 : index
    %c0_61 = arith.constant 0 : index
    %c0_62 = arith.constant 0 : index
    %193 = vector.load %arg4[%c1_60, %c0_61, %c0_62] : memref<2x32x192xbf16, #tpu.memory_space<vmem>>, vector<1x32x192xbf16>
    %194 = vector.shape_cast %193 : vector<1x32x192xbf16> to vector<32x192xbf16>
    %195 = vector.extract_strided_slice %194 {offsets = [0, 0], sizes = [32, 96], strides = [1, 1]} : vector<32x192xbf16> to vector<32x96xbf16>
    %196 = vector.extract_strided_slice %194 {offsets = [0, 96], sizes = [32, 32], strides = [1, 1]} : vector<32x192xbf16> to vector<32x32xbf16>
    %197 = vector.extract_strided_slice %194 {offsets = [0, 128], sizes = [32, 64], strides = [1, 1]} : vector<32x192xbf16> to vector<32x64xbf16>
    %c1_63 = arith.constant 1 : index
    %c0_64 = arith.constant 0 : index
    %c0_65 = arith.constant 0 : index
    %198 = vector.load %arg5[%c1_63, %c0_64, %c0_65] : memref<2x64x32xbf16, #tpu.memory_space<vmem>>, vector<1x64x32xbf16>
    %199 = vector.shape_cast %198 : vector<1x64x32xbf16> to vector<64x32xbf16>
    %200 = arith.truncf %192 : vector<8x32xf32> to vector<8x32xbf16>
    %cst_66 = arith.constant dense<0.000000e+00> : vector<8x96xf32>
    %201 = tpu.matmul %200, %195, %cst_66 {dimension_numbers = #tpu.dot_dimension_numbers<[1], [0], [0], [1], [0, 0, 1, 1], [], []>} : vector<8x32xbf16>, vector<32x96xbf16>, vector<8x96xf32> -> vector<8x96xf32>
    %c10 = arith.constant 10 : index
    %c0_67 = arith.constant 0 : index
    %202 = vector.load %arg3[%c10, %c0_67] : memref<19x128xf32, #tpu.memory_space<vmem>>, vector<1x96xf32>
    %203 = vector.broadcast %202 : vector<1x96xf32> to vector<8x96xf32>
    %204 = arith.addf %201, %203 : vector<8x96xf32>
    %205 = arith.truncf %204 : vector<8x96xf32> to vector<8x96xbf16>
    %206 = vector.extract_strided_slice %205 {offsets = [0, 0], sizes = [8, 8], strides = [1, 1]} : vector<8x96xbf16> to vector<8x8xbf16>
    %207 = vector.extract_strided_slice %205 {offsets = [0, 32], sizes = [8, 8], strides = [1, 1]} : vector<8x96xbf16> to vector<8x8xbf16>
    %208 = vector.extract_strided_slice %205 {offsets = [0, 64], sizes = [8, 8], strides = [1, 1]} : vector<8x96xbf16> to vector<8x8xbf16>
    %cst_68 = arith.constant dense<0.000000e+00> : vector<8x8xf32>
    %209 = tpu.matmul %206, %207, %cst_68 {dimension_numbers = #tpu.dot_dimension_numbers<[1], [1], [0], [0], [0, 0, 1, 0], [], []>} : vector<8x8xbf16>, vector<8x8xbf16>, vector<8x8xf32> -> vector<8x8xf32>
    %210 = vector.broadcast %4 : vector<1x8xf32> to vector<8x8xf32>
    %211 = arith.addf %209, %210 : vector<8x8xf32>
    %cst_69 = arith.constant dense<0xFF800000> : vector<8xf32>
    %212 = vector.multi_reduction <maximumf>, %211, %cst_69 [1] : vector<8x8xf32> to vector<8xf32>
    %213 = vector.shape_cast %212 : vector<8xf32> to vector<8x1xf32>
    %214 = vector.broadcast %213 : vector<8x1xf32> to vector<8x8xf32>
    %215 = arith.subf %211, %214 : vector<8x8xf32>
    %216 = math.exp %215 : vector<8x8xf32>
    %cst_70 = arith.constant dense<0.000000e+00> : vector<8xf32>
    %217 = vector.multi_reduction <add>, %216, %cst_70 [1] : vector<8x8xf32> to vector<8xf32>
    %218 = vector.shape_cast %217 : vector<8xf32> to vector<8x1xf32>
    %219 = tpu.reciprocal %218 {approx = true} : vector<8x1xf32> -> vector<8x1xf32>
    %220 = vector.broadcast %219 : vector<8x1xf32> to vector<8x8xf32>
    %221 = arith.mulf %216, %220 : vector<8x8xf32>
    %222 = arith.truncf %221 : vector<8x8xf32> to vector<8x8xbf16>
    %cst_71 = arith.constant dense<0.000000e+00> : vector<8x8xf32>
    %223 = tpu.matmul %222, %208, %cst_71 {dimension_numbers = #tpu.dot_dimension_numbers<[1], [0], [0], [1], [0, 0, 1, 1], [], []>} : vector<8x8xbf16>, vector<8x8xbf16>, vector<8x8xf32> -> vector<8x8xf32>
    %224 = vector.extract_strided_slice %205 {offsets = [0, 8], sizes = [8, 8], strides = [1, 1]} : vector<8x96xbf16> to vector<8x8xbf16>
    %225 = vector.extract_strided_slice %205 {offsets = [0, 40], sizes = [8, 8], strides = [1, 1]} : vector<8x96xbf16> to vector<8x8xbf16>
    %226 = vector.extract_strided_slice %205 {offsets = [0, 72], sizes = [8, 8], strides = [1, 1]} : vector<8x96xbf16> to vector<8x8xbf16>
    %cst_72 = arith.constant dense<0.000000e+00> : vector<8x8xf32>
    %227 = tpu.matmul %224, %225, %cst_72 {dimension_numbers = #tpu.dot_dimension_numbers<[1], [1], [0], [0], [0, 0, 1, 0], [], []>} : vector<8x8xbf16>, vector<8x8xbf16>, vector<8x8xf32> -> vector<8x8xf32>
    %228 = vector.broadcast %4 : vector<1x8xf32> to vector<8x8xf32>
    %229 = arith.addf %227, %228 : vector<8x8xf32>
    %cst_73 = arith.constant dense<0xFF800000> : vector<8xf32>
    %230 = vector.multi_reduction <maximumf>, %229, %cst_73 [1] : vector<8x8xf32> to vector<8xf32>
    %231 = vector.shape_cast %230 : vector<8xf32> to vector<8x1xf32>
    %232 = vector.broadcast %231 : vector<8x1xf32> to vector<8x8xf32>
    %233 = arith.subf %229, %232 : vector<8x8xf32>
    %234 = math.exp %233 : vector<8x8xf32>
    %cst_74 = arith.constant dense<0.000000e+00> : vector<8xf32>
    %235 = vector.multi_reduction <add>, %234, %cst_74 [1] : vector<8x8xf32> to vector<8xf32>
    %236 = vector.shape_cast %235 : vector<8xf32> to vector<8x1xf32>
    %237 = tpu.reciprocal %236 {approx = true} : vector<8x1xf32> -> vector<8x1xf32>
    %238 = vector.broadcast %237 : vector<8x1xf32> to vector<8x8xf32>
    %239 = arith.mulf %234, %238 : vector<8x8xf32>
    %240 = arith.truncf %239 : vector<8x8xf32> to vector<8x8xbf16>
    %cst_75 = arith.constant dense<0.000000e+00> : vector<8x8xf32>
    %241 = tpu.matmul %240, %226, %cst_75 {dimension_numbers = #tpu.dot_dimension_numbers<[1], [0], [0], [1], [0, 0, 1, 1], [], []>} : vector<8x8xbf16>, vector<8x8xbf16>, vector<8x8xf32> -> vector<8x8xf32>
    %242 = vector.extract_strided_slice %205 {offsets = [0, 16], sizes = [8, 8], strides = [1, 1]} : vector<8x96xbf16> to vector<8x8xbf16>
    %243 = vector.extract_strided_slice %205 {offsets = [0, 48], sizes = [8, 8], strides = [1, 1]} : vector<8x96xbf16> to vector<8x8xbf16>
    %244 = vector.extract_strided_slice %205 {offsets = [0, 80], sizes = [8, 8], strides = [1, 1]} : vector<8x96xbf16> to vector<8x8xbf16>
    %cst_76 = arith.constant dense<0.000000e+00> : vector<8x8xf32>
    %245 = tpu.matmul %242, %243, %cst_76 {dimension_numbers = #tpu.dot_dimension_numbers<[1], [1], [0], [0], [0, 0, 1, 0], [], []>} : vector<8x8xbf16>, vector<8x8xbf16>, vector<8x8xf32> -> vector<8x8xf32>
    %246 = vector.broadcast %4 : vector<1x8xf32> to vector<8x8xf32>
    %247 = arith.addf %245, %246 : vector<8x8xf32>
    %cst_77 = arith.constant dense<0xFF800000> : vector<8xf32>
    %248 = vector.multi_reduction <maximumf>, %247, %cst_77 [1] : vector<8x8xf32> to vector<8xf32>
    %249 = vector.shape_cast %248 : vector<8xf32> to vector<8x1xf32>
    %250 = vector.broadcast %249 : vector<8x1xf32> to vector<8x8xf32>
    %251 = arith.subf %247, %250 : vector<8x8xf32>
    %252 = math.exp %251 : vector<8x8xf32>
    %cst_78 = arith.constant dense<0.000000e+00> : vector<8xf32>
    %253 = vector.multi_reduction <add>, %252, %cst_78 [1] : vector<8x8xf32> to vector<8xf32>
    %254 = vector.shape_cast %253 : vector<8xf32> to vector<8x1xf32>
    %255 = tpu.reciprocal %254 {approx = true} : vector<8x1xf32> -> vector<8x1xf32>
    %256 = vector.broadcast %255 : vector<8x1xf32> to vector<8x8xf32>
    %257 = arith.mulf %252, %256 : vector<8x8xf32>
    %258 = arith.truncf %257 : vector<8x8xf32> to vector<8x8xbf16>
    %cst_79 = arith.constant dense<0.000000e+00> : vector<8x8xf32>
    %259 = tpu.matmul %258, %244, %cst_79 {dimension_numbers = #tpu.dot_dimension_numbers<[1], [0], [0], [1], [0, 0, 1, 1], [], []>} : vector<8x8xbf16>, vector<8x8xbf16>, vector<8x8xf32> -> vector<8x8xf32>
    %260 = vector.extract_strided_slice %205 {offsets = [0, 24], sizes = [8, 8], strides = [1, 1]} : vector<8x96xbf16> to vector<8x8xbf16>
    %261 = vector.extract_strided_slice %205 {offsets = [0, 56], sizes = [8, 8], strides = [1, 1]} : vector<8x96xbf16> to vector<8x8xbf16>
    %262 = vector.extract_strided_slice %205 {offsets = [0, 88], sizes = [8, 8], strides = [1, 1]} : vector<8x96xbf16> to vector<8x8xbf16>
    %cst_80 = arith.constant dense<0.000000e+00> : vector<8x8xf32>
    %263 = tpu.matmul %260, %261, %cst_80 {dimension_numbers = #tpu.dot_dimension_numbers<[1], [1], [0], [0], [0, 0, 1, 0], [], []>} : vector<8x8xbf16>, vector<8x8xbf16>, vector<8x8xf32> -> vector<8x8xf32>
    %264 = vector.broadcast %4 : vector<1x8xf32> to vector<8x8xf32>
    %265 = arith.addf %263, %264 : vector<8x8xf32>
    %cst_81 = arith.constant dense<0xFF800000> : vector<8xf32>
    %266 = vector.multi_reduction <maximumf>, %265, %cst_81 [1] : vector<8x8xf32> to vector<8xf32>
    %267 = vector.shape_cast %266 : vector<8xf32> to vector<8x1xf32>
    %268 = vector.broadcast %267 : vector<8x1xf32> to vector<8x8xf32>
    %269 = arith.subf %265, %268 : vector<8x8xf32>
    %270 = math.exp %269 : vector<8x8xf32>
    %cst_82 = arith.constant dense<0.000000e+00> : vector<8xf32>
    %271 = vector.multi_reduction <add>, %270, %cst_82 [1] : vector<8x8xf32> to vector<8xf32>
    %272 = vector.shape_cast %271 : vector<8xf32> to vector<8x1xf32>
    %273 = tpu.reciprocal %272 {approx = true} : vector<8x1xf32> -> vector<8x1xf32>
    %274 = vector.broadcast %273 : vector<8x1xf32> to vector<8x8xf32>
    %275 = arith.mulf %270, %274 : vector<8x8xf32>
    %276 = arith.truncf %275 : vector<8x8xf32> to vector<8x8xbf16>
    %cst_83 = arith.constant dense<0.000000e+00> : vector<8x8xf32>
    %277 = tpu.matmul %276, %262, %cst_83 {dimension_numbers = #tpu.dot_dimension_numbers<[1], [0], [0], [1], [0, 0, 1, 1], [], []>} : vector<8x8xbf16>, vector<8x8xbf16>, vector<8x8xf32> -> vector<8x8xf32>
    %278 = tpu.concatenate %223, %241, %259, %277 in 1 : vector<8x8xf32>, vector<8x8xf32>, vector<8x8xf32>, vector<8x8xf32> -> vector<8x32xf32>
    %279 = arith.truncf %278 : vector<8x32xf32> to vector<8x32xbf16>
    %cst_84 = arith.constant dense<0.000000e+00> : vector<8x32xf32>
    %280 = tpu.matmul %279, %196, %cst_84 {dimension_numbers = #tpu.dot_dimension_numbers<[1], [0], [0], [1], [0, 0, 1, 1], [], []>} : vector<8x32xbf16>, vector<32x32xbf16>, vector<8x32xf32> -> vector<8x32xf32>
    %c11 = arith.constant 11 : index
    %c0_85 = arith.constant 0 : index
    %281 = vector.load %arg3[%c11, %c0_85] : memref<19x128xf32, #tpu.memory_space<vmem>>, vector<1x32xf32>
    %282 = vector.broadcast %281 : vector<1x32xf32> to vector<8x32xf32>
    %283 = arith.addf %280, %282 : vector<8x32xf32>
    %284 = arith.addf %192, %283 : vector<8x32xf32>
    %cst_86 = arith.constant dense<0.000000e+00> : vector<8xf32>
    %285 = vector.multi_reduction <add>, %284, %cst_86 [1] : vector<8x32xf32> to vector<8xf32>
    %286 = vector.shape_cast %285 : vector<8xf32> to vector<8x1xf32>
    %cst_87 = arith.constant 3.200000e+01 : f32
    %287 = vector.broadcast %cst_87 : f32 to vector<8x1xf32>
    %288 = arith.divf %286, %287 : vector<8x1xf32>
    %289 = vector.broadcast %288 : vector<8x1xf32> to vector<8x32xf32>
    %290 = arith.subf %284, %289 : vector<8x32xf32>
    %291 = arith.mulf %290, %290 : vector<8x32xf32>
    %cst_88 = arith.constant dense<0.000000e+00> : vector<8xf32>
    %292 = vector.multi_reduction <add>, %291, %cst_88 [1] : vector<8x32xf32> to vector<8xf32>
    %293 = vector.shape_cast %292 : vector<8xf32> to vector<8x1xf32>
    %cst_89 = arith.constant 3.200000e+01 : f32
    %294 = vector.broadcast %cst_89 : f32 to vector<8x1xf32>
    %295 = arith.divf %293, %294 : vector<8x1xf32>
    %296 = vector.broadcast %288 : vector<8x1xf32> to vector<8x32xf32>
    %297 = arith.subf %284, %296 : vector<8x32xf32>
    %cst_90 = arith.constant 9.99999974E-6 : f32
    %298 = vector.broadcast %cst_90 : f32 to vector<8x1xf32>
    %299 = arith.addf %295, %298 : vector<8x1xf32>
    %300 = math.rsqrt %299 : vector<8x1xf32>
    %301 = vector.broadcast %300 : vector<8x1xf32> to vector<8x32xf32>
    %302 = arith.mulf %297, %301 : vector<8x32xf32>
    %c12 = arith.constant 12 : index
    %c0_91 = arith.constant 0 : index
    %303 = vector.load %arg3[%c12, %c0_91] : memref<19x128xf32, #tpu.memory_space<vmem>>, vector<1x32xf32>
    %304 = vector.broadcast %303 : vector<1x32xf32> to vector<8x32xf32>
    %305 = arith.mulf %302, %304 : vector<8x32xf32>
    %c13 = arith.constant 13 : index
    %c0_92 = arith.constant 0 : index
    %306 = vector.load %arg3[%c13, %c0_92] : memref<19x128xf32, #tpu.memory_space<vmem>>, vector<1x32xf32>
    %307 = vector.broadcast %306 : vector<1x32xf32> to vector<8x32xf32>
    %308 = arith.addf %305, %307 : vector<8x32xf32>
    %309 = arith.truncf %308 : vector<8x32xf32> to vector<8x32xbf16>
    %cst_93 = arith.constant dense<0.000000e+00> : vector<8x64xf32>
    %310 = tpu.matmul %309, %197, %cst_93 {dimension_numbers = #tpu.dot_dimension_numbers<[1], [0], [0], [1], [0, 0, 1, 1], [], []>} : vector<8x32xbf16>, vector<32x64xbf16>, vector<8x64xf32> -> vector<8x64xf32>
    %c14 = arith.constant 14 : index
    %c0_94 = arith.constant 0 : index
    %311 = vector.load %arg3[%c14, %c0_94] : memref<19x128xf32, #tpu.memory_space<vmem>>, vector<1x64xf32>
    %312 = vector.broadcast %311 : vector<1x64xf32> to vector<8x64xf32>
    %313 = arith.addf %310, %312 : vector<8x64xf32>
    %cst_95 = arith.constant 5.000000e-01 : f32
    %314 = vector.broadcast %cst_95 : f32 to vector<8x64xf32>
    %315 = arith.mulf %314, %313 : vector<8x64xf32>
    %cst_96 = arith.constant 4.471500e-02 : f32
    %316 = vector.broadcast %cst_96 : f32 to vector<8x64xf32>
    %317 = arith.mulf %316, %313 : vector<8x64xf32>
    %318 = arith.mulf %317, %313 : vector<8x64xf32>
    %319 = arith.mulf %318, %313 : vector<8x64xf32>
    %320 = arith.addf %313, %319 : vector<8x64xf32>
    %cst_97 = arith.constant 0.797884583 : f32
    %321 = vector.broadcast %cst_97 : f32 to vector<8x64xf32>
    %322 = arith.mulf %321, %320 : vector<8x64xf32>
    %323 = math.tanh %322 : vector<8x64xf32>
    %cst_98 = arith.constant 1.000000e+00 : f32
    %324 = vector.broadcast %cst_98 : f32 to vector<8x64xf32>
    %325 = arith.addf %324, %323 : vector<8x64xf32>
    %326 = arith.mulf %315, %325 : vector<8x64xf32>
    %327 = arith.truncf %326 : vector<8x64xf32> to vector<8x64xbf16>
    %cst_99 = arith.constant dense<0.000000e+00> : vector<8x32xf32>
    %328 = tpu.matmul %327, %199, %cst_99 {dimension_numbers = #tpu.dot_dimension_numbers<[1], [0], [0], [1], [0, 0, 1, 1], [], []>} : vector<8x64xbf16>, vector<64x32xbf16>, vector<8x32xf32> -> vector<8x32xf32>
    %c15 = arith.constant 15 : index
    %c0_100 = arith.constant 0 : index
    %329 = vector.load %arg3[%c15, %c0_100] : memref<19x128xf32, #tpu.memory_space<vmem>>, vector<1x32xf32>
    %330 = vector.broadcast %329 : vector<1x32xf32> to vector<8x32xf32>
    %331 = arith.addf %328, %330 : vector<8x32xf32>
    %332 = arith.addf %308, %331 : vector<8x32xf32>
    %cst_101 = arith.constant dense<0.000000e+00> : vector<8xf32>
    %333 = vector.multi_reduction <add>, %332, %cst_101 [1] : vector<8x32xf32> to vector<8xf32>
    %334 = vector.shape_cast %333 : vector<8xf32> to vector<8x1xf32>
    %cst_102 = arith.constant 3.200000e+01 : f32
    %335 = vector.broadcast %cst_102 : f32 to vector<8x1xf32>
    %336 = arith.divf %334, %335 : vector<8x1xf32>
    %337 = vector.broadcast %336 : vector<8x1xf32> to vector<8x32xf32>
    %338 = arith.subf %332, %337 : vector<8x32xf32>
    %339 = arith.mulf %338, %338 : vector<8x32xf32>
    %cst_103 = arith.constant dense<0.000000e+00> : vector<8xf32>
    %340 = vector.multi_reduction <add>, %339, %cst_103 [1] : vector<8x32xf32> to vector<8xf32>
    %341 = vector.shape_cast %340 : vector<8xf32> to vector<8x1xf32>
    %cst_104 = arith.constant 3.200000e+01 : f32
    %342 = vector.broadcast %cst_104 : f32 to vector<8x1xf32>
    %343 = arith.divf %341, %342 : vector<8x1xf32>
    %344 = vector.broadcast %336 : vector<8x1xf32> to vector<8x32xf32>
    %345 = arith.subf %332, %344 : vector<8x32xf32>
    %cst_105 = arith.constant 9.99999974E-6 : f32
    %346 = vector.broadcast %cst_105 : f32 to vector<8x1xf32>
    %347 = arith.addf %343, %346 : vector<8x1xf32>
    %348 = math.rsqrt %347 : vector<8x1xf32>
    %349 = vector.broadcast %348 : vector<8x1xf32> to vector<8x32xf32>
    %350 = arith.mulf %345, %349 : vector<8x32xf32>
    %c16 = arith.constant 16 : index
    %c0_106 = arith.constant 0 : index
    %351 = vector.load %arg3[%c16, %c0_106] : memref<19x128xf32, #tpu.memory_space<vmem>>, vector<1x32xf32>
    %352 = vector.broadcast %351 : vector<1x32xf32> to vector<8x32xf32>
    %353 = arith.mulf %350, %352 : vector<8x32xf32>
    %c17 = arith.constant 17 : index
    %c0_107 = arith.constant 0 : index
    %354 = vector.load %arg3[%c17, %c0_107] : memref<19x128xf32, #tpu.memory_space<vmem>>, vector<1x32xf32>
    %355 = vector.broadcast %354 : vector<1x32xf32> to vector<8x32xf32>
    %356 = arith.addf %353, %355 : vector<8x32xf32>
    %357 = arith.truncf %356 : vector<8x32xf32> to vector<8x32xbf16>
    %c0_108 = arith.constant 0 : index
    %c0_109 = arith.constant 0 : index
    %358 = vector.load %arg6[%c0_108, %c0_109] : memref<32x128xbf16, #tpu.memory_space<vmem>>, vector<32x128xbf16>
    %cst_110 = arith.constant dense<0.000000e+00> : vector<8x128xf32>
    %359 = tpu.matmul %357, %358, %cst_110 {dimension_numbers = #tpu.dot_dimension_numbers<[1], [0], [0], [1], [0, 0, 1, 1], [], []>} : vector<8x32xbf16>, vector<32x128xbf16>, vector<8x128xf32> -> vector<8x128xf32>
    %c18 = arith.constant 18 : index
    %c0_111 = arith.constant 0 : index
    %360 = vector.load %arg3[%c18, %c0_111] : memref<19x128xf32, #tpu.memory_space<vmem>>, vector<1x128xf32>
    %361 = vector.broadcast %360 : vector<1x128xf32> to vector<8x128xf32>
    %362 = arith.addf %359, %361 : vector<8x128xf32>
    %c0_112 = arith.constant 0 : index
    %c0_113 = arith.constant 0 : index
    %c0_114 = arith.constant 0 : index
    %363 = vector.load %arg7[%c0_112, %c0_113, %c0_114] : memref<1x8x128xf32, #tpu.memory_space<vmem>>, vector<1x8x128xf32>
    %364 = vector.shape_cast %363 : vector<1x8x128xf32> to vector<8x128xf32>
    %365 = vector.shape_cast %362 : vector<8x128xf32> to vector<1x8x128xf32>
    tpu.vector_store %arg7[%c0_112, %c0_113, %c0_114], %365 {strides = array<i32>} : memref<1x8x128xf32, #tpu.memory_space<vmem>>, vector<1x8x128xf32>,
    return
  }
  func.func @transform_0(%arg0: i32) -> (i32, i32, i32) {
    %c0_i32 = arith.constant 0 : i32
    %c0_i32_0 = arith.constant 0 : i32
    %c0_i32_1 = arith.constant 0 : i32
    return %arg0, %c0_i32, %c0_i32_0 : i32, i32, i32
  }
  func.func @transform_1(%arg0: i32) -> (i32, i32, i32) {
    %c0_i32 = arith.constant 0 : i32
    %c0_i32_0 = arith.constant 0 : i32
    %c0_i32_1 = arith.constant 0 : i32
    return %arg0, %c0_i32, %c0_i32_0 : i32, i32, i32
  }
  func.func @transform_2(%arg0: i32) -> (i32, i32) {
    %c0_i32 = arith.constant 0 : i32
    %c0_i32_0 = arith.constant 0 : i32
    %c0_i32_1 = arith.constant 0 : i32
    return %c0_i32, %c0_i32_0 : i32, i32
  }
  func.func @transform_3(%arg0: i32) -> (i32, i32, i32) {
    %c0_i32 = arith.constant 0 : i32
    %c0_i32_0 = arith.constant 0 : i32
    %c0_i32_1 = arith.constant 0 : i32
    %c0_i32_2 = arith.constant 0 : i32
    return %c0_i32, %c0_i32_0, %c0_i32_1 : i32, i32, i32
  }
  func.func @transform_4(%arg0: i32) -> (i32, i32, i32) {
    %c0_i32 = arith.constant 0 : i32
    %c0_i32_0 = arith.constant 0 : i32
    %c0_i32_1 = arith.constant 0 : i32
    %c0_i32_2 = arith.constant 0 : i32
    return %c0_i32, %c0_i32_0, %c0_i32_1 : i32, i32, i32
  }
  func.func @transform_5(%arg0: i32) -> (i32, i32) {
    %c0_i32 = arith.constant 0 : i32
    %c0_i32_0 = arith.constant 0 : i32
    %c0_i32_1 = arith.constant 0 : i32
    return %c0_i32, %c0_i32_0 : i32, i32
  }
  func.func @transform_6(%arg0: i32) -> (i32, i32, i32) {
    %c0_i32 = arith.constant 0 : i32
    %c0_i32_0 = arith.constant 0 : i32
    %c0_i32_1 = arith.constant 0 : i32
    return %arg0, %c0_i32, %c0_i32_0 : i32, i32, i32
  }
}

</mosaic_0001>

<llo_original>
// kernel: echr_forward.1
$region0: #{echr_forward.1}
  #allocation0 [shape = 'u32[]', space=smem, size = 0x4, offset = 0x4, fixed_abs, tag = 'smem constant byte address 0x4 - core index']
  #allocation1 [shape = 'u32[144,128]{1,0:T(1,128)}', space=vmem, size = 0x12000, scoped, tag = 'internal scratch']
  %s0 = inlined_call_operand.vmem [shape: bf16[2,8,32], index: 0, kind: input, shape index: {}]
  %s1 = inlined_call_operand.vmem [shape: f32[2,1,8], index: 1, kind: input, shape index: {}]
  %s2 = inlined_call_operand.vmem [shape: f32[19,128], index: 2, kind: input, shape index: {}]
  %s3 = inlined_call_operand.vmem [shape: bf16[2,32,192], index: 3, kind: input, shape index: {}]
  %s4 = inlined_call_operand.vmem [shape: bf16[2,64,32], index: 4, kind: input, shape index: {}]
  %s5 = inlined_call_operand.vmem [shape: bf16[32,128], index: 5, kind: input, shape index: {}]
  %s6 = inlined_call_operand.vmem [shape: f32[2,8,128], index: 6, kind: output, shape index: {}]
  %s7 = sld [smem:[#allocation0]]
  $region57: #{echr_forward.1} parent=0
    _
  %s9 = ssub.s32 1, %s7
  %s10 = scalar_select 0, %s9, %s7
  loop: start=0, step=1, limit=4
  $region2: #{echr_forward.1} parent=0 // loop_pre_header
    _
  $region3: #{echr_forward.1} parent=0 // loop_header
    %s12 = sphi 0, %s16
    %p13 = scmp.ge.s32.totalorder %s12, 4
    %s22 = sphi 0, %s24
    %s25 = sphi 0, %s22
    %s26 = sphi 0, %s25
    %s42 = sphi 0, %s26
    %s48 = sphi 0, %s50
    %s51 = sphi 0, %s48
    %s52 = sphi 0, %s51
    %s68 = sphi 0, %s52
    %s72 = sphi 0, %s72
    %s74 = sphi 0, %s72
    %s75 = sphi 0, %s74
    %s89 = sphi 0, %s75
    %s93 = sphi 0, %s93
    %s95 = sphi 0, %s93
    %s96 = sphi 0, %s95
    %s110 = sphi 0, %s96
    %s114 = sphi 0, %s114
    %s116 = sphi 0, %s114
    %s117 = sphi 0, %s116
    %s131 = sphi 0, %s117
    %s135 = sphi 0, %s135
    %s137 = sphi 0, %s135
    %s138 = sphi 0, %s137
    %s152 = sphi 0, %s138
    %s158 = sphi 0, %s160
    %s161 = sphi 0, %s158
    %s162 = sphi 0, %s161
    %s178 = sphi 0, %s162
  $region4: #{echr_forward.1} parent=0 // loop_header_branch
    %15 = sbr.rel (%p13) target = $region8
  $region5: #{echr_forward.1} parent=0 // loop_body
    %s17 = ssub.s32 %s12, 1
    %s18 = ssub.s32 %s12, 2
    %s19 = sadd.s32 %s12, 1
    %s20 = ssub.s32 %s12, %s19
    %p21 = scmp.eq.s32.totalorder %s20, 0
    %s23 = sadd.s32 %s22, 1
    %s24 = scalar_select %p21, %s22, %s23
    %p27 = pneg %p21
    %p28 = scmp.eq.s32.totalorder %s12, 1
    %p29 = por %p27, %p28
    %p30 = scmp.ne.s32.totalorder %s22, %s25
    %p31 = scmp.eq.s32.totalorder %s12, 0
    %p32 = por %p30, %p31
    %p33 = scmp.ne.s32.totalorder %s22, %s25
    %p34 = scmp.eq.s32.totalorder %s17, 1
    %p35 = por %p33, %p34
    %p36 = scmp.ne.s32.totalorder %s25, %s26
    %p37 = scmp.eq.s32.totalorder %s17, 0
    %p38 = por %p36, %p37
    %p39 = scmp.ne.s32.totalorder %s25, %s26
    %p40 = scmp.eq.s32.totalorder %s18, 1
    %p41 = por %p39, %p40
    %p43 = scmp.ne.s32.totalorder %s26, %s42
    %p44 = scmp.eq.s32.totalorder %s18, 0
    %p45 = por %p43, %p44
    %s46 = ssub.s32 %s12, %s19
    %p47 = scmp.eq.s32.totalorder %s46, 0
    %s49 = sadd.s32 %s48, 1
    %s50 = scalar_select %p47, %s48, %s49
    %p53 = pneg %p47
    %p54 = scmp.eq.s32.totalorder %s12, 1
    %p55 = por %p53, %p54
    %p56 = scmp.ne.s32.totalorder %s48, %s51
    %p57 = scmp.eq.s32.totalorder %s12, 0
    %p58 = por %p56, %p57
    %p59 = scmp.ne.s32.totalorder %s48, %s51
    %p60 = scmp.eq.s32.totalorder %s17, 1
    %p61 = por %p59, %p60
    %p62 = scmp.ne.s32.totalorder %s51, %s52
    %p63 = scmp.eq.s32.totalorder %s17, 0
    %p64 = por %p62, %p63
    %p65 = scmp.ne.s32.totalorder %s51, %s52
    %p66 = scmp.eq.s32.totalorder %s18, 1
    %p67 = por %p65, %p66
    %p69 = scmp.ne.s32.totalorder %s52, %s68
    %p70 = scmp.eq.s32.totalorder %s18, 0
    %p71 = por %p69, %p70
    %s73 = sadd.s32 %s72, 1
    %p76 = scmp.eq.s32.totalorder %s12, 1
    %p77 = scmp.ne.s32.totalorder %s72, %s74
    %p78 = scmp.eq.s32.totalorder %s12, 0
    %p79 = por %p77, %p78
    %p80 = scmp.ne.s32.totalorder %s72, %s74
    %p81 = scmp.eq.s32.totalorder %s17, 1
    %p82 = por %p80, %p81
    %p83 = scmp.ne.s32.totalorder %s74, %s75
    %p84 = scmp.eq.s32.totalorder %s17, 0
    %p85 = por %p83, %p84
    %p86 = scmp.ne.s32.totalorder %s74, %s75
    %p87 = scmp.eq.s32.totalorder %s18, 1
    %p88 = por %p86, %p87
    %p90 = scmp.ne.s32.totalorder %s75, %s89
    %p91 = scmp.eq.s32.totalorder %s18, 0
    %p92 = por %p90, %p91
    %s94 = sadd.s32 %s93, 1
    %p97 = scmp.eq.s32.totalorder %s12, 1
    %p98 = scmp.ne.s32.totalorder %s93, %s95
    %p99 = scmp.eq.s32.totalorder %s12, 0
    %p100 = por %p98, %p99
    %p101 = scmp.ne.s32.totalorder %s93, %s95
    %p102 = scmp.eq.s32.totalorder %s17, 1
    %p103 = por %p101, %p102
    %p104 = scmp.ne.s32.totalorder %s95, %s96
    %p105 = scmp.eq.s32.totalorder %s17, 0
    %p106 = por %p104, %p105
    %p107 = scmp.ne.s32.totalorder %s95, %s96
    %p108 = scmp.eq.s32.totalorder %s18, 1
    %p109 = por %p107, %p108
    %p111 = scmp.ne.s32.totalorder %s96, %s110
    %p112 = scmp.eq.s32.totalorder %s18, 0
    %p113 = por %p111, %p112
    %s115 = sadd.s32 %s114, 1
    %p118 = scmp.eq.s32.totalorder %s12, 1
    %p119 = scmp.ne.s32.totalorder %s114, %s116
    %p120 = scmp.eq.s32.totalorder %s12, 0
    %p121 = por %p119, %p120
    %p122 = scmp.ne.s32.totalorder %s114, %s116
    %p123 = scmp.eq.s32.totalorder %s17, 1
    %p124 = por %p122, %p123
    %p125 = scmp.ne.s32.totalorder %s116, %s117
    %p126 = scmp.eq.s32.totalorder %s17, 0
    %p127 = por %p125, %p126
    %p128 = scmp.ne.s32.totalorder %s116, %s117
    %p129 = scmp.eq.s32.totalorder %s18, 1
    %p130 = por %p128, %p129
    %p132 = scmp.ne.s32.totalorder %s117, %s131
    %p133 = scmp.eq.s32.totalorder %s18, 0
    %p134 = por %p132, %p133
    %s136 = sadd.s32 %s135, 1
    %p139 = scmp.eq.s32.totalorder %s12, 1
    %p140 = scmp.ne.s32.totalorder %s135, %s137
    %p141 = scmp.eq.s32.totalorder %s12, 0
    %p142 = por %p140, %p141
    %p143 = scmp.ne.s32.totalorder %s135, %s137
    %p144 = scmp.eq.s32.totalorder %s17, 1
    %p145 = por %p143, %p144
    %p146 = scmp.ne.s32.totalorder %s137, %s138
    %p147 = scmp.eq.s32.totalorder %s17, 0
    %p148 = por %p146, %p147
    %p149 = scmp.ne.s32.totalorder %s137, %s138
    %p150 = scmp.eq.s32.totalorder %s18, 1
    %p151 = por %p149, %p150
    %p153 = scmp.ne.s32.totalorder %s138, %s152
    %p154 = scmp.eq.s32.totalorder %s18, 0
    %p155 = por %p153, %p154
    %s156 = ssub.s32 %s12, %s19
    %p157 = scmp.eq.s32.totalorder %s156, 0
    %s159 = sadd.s32 %s158, 1
    %s160 = scalar_select %p157, %s158, %s159
    %p163 = pneg %p157
    %p164 = scmp.eq.s32.totalorder %s12, 1
    %p165 = por %p163, %p164
    %p166 = scmp.ne.s32.totalorder %s158, %s161
    %p167 = scmp.eq.s32.totalorder %s12, 0
    %p168 = por %p166, %p167
    %p169 = scmp.ne.s32.totalorder %s158, %s161
    %p170 = scmp.eq.s32.totalorder %s17, 1
    %p171 = por %p169, %p170
    %p172 = scmp.ne.s32.totalorder %s161, %s162
    %p173 = scmp.eq.s32.totalorder %s17, 0
    %p174 = por %p172, %p173
    %p175 = scmp.ne.s32.totalorder %s161, %s162
    %p176 = scmp.eq.s32.totalorder %s18, 1
    %p177 = por %p175, %p176
    %p179 = scmp.ne.s32.totalorder %s162, %s178
    %p180 = scmp.eq.s32.totalorder %s18, 0
    %p181 = por %p179, %p180
    %p182 = scmp.le.s32.totalorder 1, %s12
    %p183 = scmp.lt.s32.totalorder %s12, 3
    %p184 = pnand %p182, %p183
    %p185 = pneg %p184
    // Predicated region
    $region9: #{echr_forward.1} parent=5 // pred_check
      _
    $region10: #{echr_forward.1} parent=5 // pred_check_branch
      %187 = sbr.rel (%p184) target = $region12
    $region11: #{echr_forward.1} parent=5 // pred_region
      %s188 = ssub.s32 %s12, 1
      // Predicated region
      $region13: #{echr_forward.1} parent=11 // pred_check
        %p189 = pneg %p85
      $region14: #{echr_forward.1} parent=11 // pred_check_branch
        %191 = sbr.rel (%p189) target = $region16
      $region15: #{echr_forward.1} parent=11 // pred_region
        _
      $region16: #{echr_forward.1} parent=11 // pred_fallthru
        _
      // Predicated region
      $region17: #{echr_forward.1} parent=11 // pred_check
        %p192 = pneg %p106
      $region18: #{echr_forward.1} parent=11 // pred_check_branch
        %194 = sbr.rel (%p192) target = $region20
      $region19: #{echr_forward.1} parent=11 // pred_region
        _
      $region20: #{echr_forward.1} parent=11 // pred_fallthru
        _
      // Predicated region
      $region21: #{echr_forward.1} parent=11 // pred_check
        %p195 = pneg %p127
      $region22: #{echr_forward.1} parent=11 // pred_check_branch
        %197 = sbr.rel (%p195) target = $region24
      $region23: #{echr_forward.1} parent=11 // pred_region
        _
      $region24: #{echr_forward.1} parent=11 // pred_fallthru
        _
      // Predicated region
      $region25: #{echr_forward.1} parent=11 // pred_check
        %p198 = pneg %p148
      $region26: #{echr_forward.1} parent=11 // pred_check_branch
        %200 = sbr.rel (%p198) target = $region28
      $region27: #{echr_forward.1} parent=11 // pred_region
        _
      $region28: #{echr_forward.1} parent=11 // pred_fallthru
        _
    $region12: #{echr_forward.1} parent=5 // pred_fallthru
      _
    %p201 = scmp.lt.s32.totalorder %s12, 2
    // Predicated region
    $region29: #{echr_forward.1} parent=5 // pred_check
      %p202 = pneg %p201
    $region30: #{echr_forward.1} parent=5 // pred_check_branch
      %204 = sbr.rel (%p202) target = $region32
    $region31: #{echr_forward.1} parent=5 // pred_region
      // Predicated region
      $region33: #{echr_forward.1} parent=31 // pred_check
        %p205 = pneg %p32
      $region34: #{echr_forward.1} parent=31 // pred_check_branch
        %207 = sbr.rel (%p205) target = $region36
      $region35: #{echr_forward.1} parent=31 // pred_region
        %p208 = scmp.lt.s32.totalorder %s12, 1
        %s209 = scalar_select %p208, %s12, 1
        %s210 = smul.addr %s209, 4
        %s211 = scalar_lea.vmem %s0, %s210
      $region36: #{echr_forward.1} parent=31 // pred_fallthru
        _
      // Predicated region
      $region37: #{echr_forward.1} parent=31 // pred_check
        %p212 = pneg %p58
      $region38: #{echr_forward.1} parent=31 // pred_check_branch
        %214 = sbr.rel (%p212) target = $region40
      $region39: #{echr_forward.1} parent=31 // pred_region
        %p215 = scmp.lt.s32.totalorder %s12, 1
        %s216 = scalar_select %p215, %s12, 1
        %s217 = scalar_lea.vmem %s1, %s216
      $region40: #{echr_forward.1} parent=31 // pred_fallthru
        _
    $region32: #{echr_forward.1} parent=5 // pred_fallthru
      _
    %p218 = scmp.le.s32.totalorder 1, %s12
    %p219 = scmp.lt.s32.totalorder %s12, 3
    %p220 = pnand %p218, %p219
    %p221 = pneg %p220
    // Predicated region
    $region41: #{echr_forward.1} parent=5 // pred_check
      _
    $region42: #{echr_forward.1} parent=5 // pred_check_branch
      %223 = sbr.rel (%p220) target = $region44
    $region43: #{echr_forward.1} parent=5 // pred_region
      %s224 = ssub.s32 %s12, 1
      %p225 = scmp.lt.s32.totalorder %s17, 1
      %s226 = scalar_select %p225, %s17, 1
      %s227 = smul.addr %s226, 4
      %s228 = scalar_lea.vmem %s0, %s227
      %p229 = pneg %p38
      %p230 = pneg %p35
      %p231 = scmp.lt.s32.totalorder %s17, 1
      %s232 = scalar_select %p231, %s17, 1
      %s233 = scalar_lea.vmem %s1, %s232
      %p234 = pneg %p64
      %p235 = pneg %p61
      %p236 = pneg %p85
      %p237 = pneg %p82
      %p238 = pneg %p106
      %p239 = pneg %p103
      %p240 = pneg %p127
      %p241 = pneg %p124
      %p242 = pneg %p148
      %p243 = pneg %p145
      %p244 = pneg %p174
      %p245 = pneg %p171
      %p246 = scmp.lt.s32.totalorder %s17, 1
      %s247 = scalar_select %p246, %s17, 1
      %s248 = smul.addr %s247, 8
      %s249 = scalar_lea.vmem %s6, %s248
      %p250 = scmp.lt.s32.totalorder %s17, 1
      %s251 = scalar_select %p250, %s17, 1
      %s252 = smul.addr %s251, 4
      %s253 = scalar_lea.vmem %s0, %s252
      %p254 = scmp.lt.s32.totalorder %s17, 1
      %s255 = scalar_select %p254, %s17, 1
      %s256 = scalar_lea.vmem %s1, %s255
      %p257 = scmp.lt.s32.totalorder %s17, 1
      %s258 = scalar_select %p257, %s17, 1
      %s259 = smul.addr %s258, 8
      %s260 = scalar_lea.vmem %s6, %s259
      %v262 = vld [vmem:[%s253] sm:$0xf]
      %v263 = vunpack.c.l.bf16 %v262
      %v264 = vld [vmem:[%s256] sm:$0x1]
      %vm265 = vcmask 261120
      %v266 = vsel %vm265, %v263, 0.0
      %267 = vadd.xlane.f32.xlu0 %v266
      %v268 = vpop.xlane.xlu0 %267
      %v269 = vrcp.pop 32.0
      %v270 = vmul.f32 %v268, %v269
      %v271 = vsub.f32 %v263, %v270
      %v272 = vmul.f32 %v271, %v271
      %v273 = vsel %vm265, %v272, 0.0
      %274 = vadd.xlane.f32.xlu0 %v273
      %v275 = vpop.xlane.xlu0 %274
      %v276 = vmul.f32 %v275, %v269
      %v277 = vadd.f32 %v276, 1e-05
      %v278 = vrsqrt.pop %v277
      %v279 = vmul.f32 %v271, %v278
      %v280 = vld [vmem:[%s2] sm:$0x1]
      %v281 = vlaneseq
      %v282 = vshrl.u32 %v281, 7
      %v283 = vsub.s32 0, %v282
      %v284 = vrot.slane %v280, %v283
      %v285 = vmul.f32 %v279, %v284
      %v286 = vld [vmem:[%s2 + $0x1] sm:$0x1]
      %v287 = vlaneseq
      %v288 = vshrl.u32 %v287, 7
      %v289 = vsub.s32 0, %v288
      %v290 = vrot.slane %v286, %v289
      %v291 = vadd.f32 %v285, %v290
      %v292 = vld [vmem:[%s3] sm:$0xff]
      %v293 = vld [vmem:[%s3 + $0x8] sm:$0xff]
      %v294 = vld [vmem:[%s3 + $0x10] sm:$0xff]
      %v295 = vld [vmem:[%s3 + $0x18] sm:$0xff]
      %v296 = vld [vmem:[%s4] sm:$0xf]
      %v297 = vld [vmem:[%s4 + $0x4] sm:$0xf]
      %v298 = vld [vmem:[%s4 + $0x8] sm:$0xf]
      %v299 = vld [vmem:[%s4 + $0xc] sm:$0xf]
      %v300 = vld [vmem:[%s4 + $0x10] sm:$0xf]
      %v301 = vld [vmem:[%s4 + $0x14] sm:$0xf]
      %v302 = vld [vmem:[%s4 + $0x18] sm:$0xf]
      %v303 = vld [vmem:[%s4 + $0x1c] sm:$0xf]
      %v304 = vpack.c.bf16 %v291, %v291
      %v305 = vld [vmem:[%s2 + $0x2] sm:$0x1]
      %v306 = vlaneseq
      %v307 = vshrl.u32 %v306, 7
      %v308 = vsub.s32 0, %v307
      %v309 = vrot.slane %v305, %v308
      %v314 = vunpack.c.l.b16 %v292
      %v315 = vunpack.c.l.b16 %v293
      %v316 = vunpack.c.l.b16 %v294
      %v317 = vunpack.c.l.b16 %v295
      %v318 = vpack.c.b16 %v315, %v314
      %v319 = vpack.c.b16 %v317, %v316
      %v323 = vsel %vm265, %v304, 0
      %325 = vmatprep.subr.bf16.mxu0 0
      %326 = vmatpush1.bf16.msra.mxu0 %v318
      %327 = vmatprep.subr.bf16.mxu0 0
      %328 = vmatpush1.bf16.msra.mxu0 %v319
      %329 = vmatprep.subr.bf16.mxu0 0
      %330 = vmatpush1.bf16.msra.mxu0 0
      %331 = vmatprep.subr.bf16.mxu0 0
      %332 = vmatpush1.bf16.msra.mxu0 0
      %333 = vmatprep.subr.bf16.mxu0 0
      %334 = vmatpush1.bf16.msra.mxu0 0
      %335 = vmatprep.subr.bf16.mxu0 0
      %336 = vmatpush1.bf16.msra.mxu0 0
      %337 = vmatprep.subr.bf16.mxu0 0
      %338 = vmatpush1.bf16.msra.mxu0 0
      %339 = vmatprep.subr.bf16.mxu0 0
      %340 = vmatpush1.bf16.msra.mxu0 0
      %341 = vmatprep.subr.bf16.mxu0 0
      %342 = vmatpush1.bf16.msra.mxu0 0
      %343 = vmatprep.subr.bf16.mxu0 0
      %344 = vmatpush1.bf16.msra.mxu0 0
      %345 = vmatprep.subr.bf16.mxu0 0
      %346 = vmatpush1.bf16.msra.mxu0 0
      %347 = vmatprep.subr.bf16.mxu0 0
      %348 = vmatpush1.bf16.msra.mxu0 0
      %349 = vmatprep.subr.bf16.mxu0 0
      %350 = vmatpush1.bf16.msra.mxu0 0
      %351 = vmatprep.subr.bf16.mxu0 0
      %352 = vmatpush1.bf16.msra.mxu0 0
      %353 = vmatprep.subr.bf16.mxu0 0
      %354 = vmatpush1.bf16.msra.mxu0 0
      %355 = vmatprep.subr.bf16.mxu0 0
      %356 = vmatpush1.bf16.msra.mxu0 0
      %357 = vmatprep.mubr.bf16.mxu0 0
      %358 = vmatmul.mubr.bf16.gmra.mrb[0].mxu0 %v323
      %v359 = vpop.f32.mrb[0].mxu0
      %v360 = vadd.f32 %v309, %v359
      %v361 = vpop.f32.mrb[0].mxu0
      %v362 = vpop.f32.mrb[0].mxu0
      %v363 = vpop.f32.mrb[0].mxu0
      %364 = vdwg.mxu0
      %v365 = vpack.c.bf16 %v360, %v360
      %v367 = vlaneseq
      %v368 = vshrl.u32 %v367, 7
      %v369 = vsub.s32 0, %v368
      %v370 = vrot.slane %v264, %v369
      %373 = vrot.lane.b32.xlu0 %v365, 96
      %v374 = vpop.permute.xlu0 %373
      %vm375 = vcmask 64512
      %v377 = vsel %vm375, %v365, 0
      %v380 = vsel %vm375, %v374, 0
      %382 = vmatprep.subr.bf16.mxu0 0
      %383 = vmatpush1.bf16.xpose.msra.mxu0 %v380
      %384 = vmatprep.subr.bf16.mxu0 0
      %385 = vmatpush1.bf16.xpose.msra.mxu0 0
      %386 = vmatprep.subr.bf16.mxu0 0
      %387 = vmatpush1.bf16.xpose.msra.mxu0 0
      %388 = vmatprep.subr.bf16.mxu0 0
      %389 = vmatpush1.bf16.xpose.msra.mxu0 0
      %390 = vmatprep.subr.bf16.mxu0 0
      %391 = vmatpush1.bf16.xpose.msra.mxu0 0
      %392 = vmatprep.subr.bf16.mxu0 0
      %393 = vmatpush1.bf16.xpose.msra.mxu0 0
      %394 = vmatprep.subr.bf16.mxu0 0
      %395 = vmatpush1.bf16.xpose.msra.mxu0 0
      %396 = vmatprep.subr.bf16.mxu0 0
      %397 = vmatpush1.bf16.xpose.msra.mxu0 0
      %398 = vmatprep.subr.bf16.mxu0 0
      %399 = vmatpush1.bf16.xpose.msra.mxu0 0
      %400 = vmatprep.subr.bf16.mxu0 0
      %401 = vmatpush1.bf16.xpose.msra.mxu0 0
      %402 = vmatprep.subr.bf16.mxu0 0
      %403 = vmatpush1.bf16.xpose.msra.mxu0 0
      %404 = vmatprep.subr.bf16.mxu0 0
      %405 = vmatpush1.bf16.xpose.msra.mxu0 0
      %406 = vmatprep.subr.bf16.mxu0 0
      %407 = vmatpush1.bf16.xpose.msra.mxu0 0
      %408 = vmatprep.subr.bf16.mxu0 0
      %409 = vmatpush1.bf16.xpose.msra.mxu0 0
      %410 = vmatprep.subr.bf16.mxu0 0
      %411 = vmatpush1.bf16.xpose.msra.mxu0 0
      %412 = vmatprep.subr.bf16.mxu0 0
      %413 = vmatpush1.bf16.xpose.msra.mxu0 0
      %414 = vmatprep.mubr.bf16.mxu0 0
      %415 = vmatmul.mubr.bf16.gmra.mrb[0].mxu0 %v377
      %v416 = vpop.f32.mrb[0].mxu0
      %v417 = vadd.f32 %v370, %v416
      %v418 = vpop.f32.mrb[0].mxu0
      %v419 = vpop.f32.mrb[0].mxu0
      %v420 = vpop.f32.mrb[0].mxu0
      %421 = vdwg.mxu0
      %v422 = vsel %vm375, %v417, -inf
      %423 = vmax.xlane.f32.xlu0 %v422
      %v424 = vpop.xlane.xlu0 %423
      %v425 = vsub.f32 %v417, %v424
      %v426 = vmul.f32 %v425, 1.442695
      %v427 = vpow.pop %v426
      %v428 = vsel %vm375, %v427, 0.0
      %429 = vadd.xlane.f32.xlu0 %v428
      %v430 = vpop.xlane.xlu0 %429
      %v431 = vrcp.pop %v430
      %v432 = vmul.f32 %v427, %v431
      %v433 = vpack.c.bf16 %v432, %v432
      %434 = vrot.lane.b32.xlu0 %v365, 64
      %v435 = vpop.permute.xlu0 %434
      %v437 = vsel %vm375, %v433, 0
      %vm439 = vcmask 1043456
      %v441 = vsel %vm439, %v435, 0
      %443 = vmatprep.subr.bf16.mxu0 0
      %444 = vmatpush1.bf16.msra.mxu0 %v441
      %445 = vmatprep.subr.bf16.mxu0 0
      %446 = vmatpush1.bf16.msra.mxu0 0
      %447 = vmatprep.subr.bf16.mxu0 0
      %448 = vmatpush1.bf16.msra.mxu0 0
      %449 = vmatprep.subr.bf16.mxu0 0
      %450 = vmatpush1.bf16.msra.mxu0 0
      %451 = vmatprep.subr.bf16.mxu0 0
      %452 = vmatpush1.bf16.msra.mxu0 0
      %453 = vmatprep.subr.bf16.mxu0 0
      %454 = vmatpush1.bf16.msra.mxu0 0
      %455 = vmatprep.subr.bf16.mxu0 0
      %456 = vmatpush1.bf16.msra.mxu0 0
      %457 = vmatprep.subr.bf16.mxu0 0
      %458 = vmatpush1.bf16.msra.mxu0 0
      %459 = vmatprep.subr.bf16.mxu0 0
      %460 = vmatpush1.bf16.msra.mxu0 0
      %461 = vmatprep.subr.bf16.mxu0 0
      %462 = vmatpush1.bf16.msra.mxu0 0
      %463 = vmatprep.subr.bf16.mxu0 0
      %464 = vmatpush1.bf16.msra.mxu0 0
      %465 = vmatprep.subr.bf16.mxu0 0
      %466 = vmatpush1.bf16.msra.mxu0 0
      %467 = vmatprep.subr.bf16.mxu0 0
      %468 = vmatpush1.bf16.msra.mxu0 0
      %469 = vmatprep.subr.bf16.mxu0 0
      %470 = vmatpush1.bf16.msra.mxu0 0
      %471 = vmatprep.subr.bf16.mxu0 0
      %472 = vmatpush1.bf16.msra.mxu0 0
      %473 = vmatprep.subr.bf16.mxu0 0
      %474 = vmatpush1.bf16.msra.mxu0 0
      %475 = vmatprep.mubr.bf16.mxu0 0
      %476 = vmatmul.mubr.bf16.gmra.mrb[0].mxu0 %v437
      %v477 = vpop.f32.mrb[0].mxu0
      %v478 = vadd.f32 0.0, %v477
      %v479 = vpop.f32.mrb[0].mxu0
      %v480 = vpop.f32.mrb[0].mxu0
      %v481 = vpop.f32.mrb[0].mxu0
      %482 = vdwg.mxu0
      %483 = vrot.lane.b32.xlu0 %v365, 120
      %v484 = vpop.permute.xlu0 %483
      %485 = vrot.lane.b32.xlu0 %v365, 88
      %v486 = vpop.permute.xlu0 %485
      %v488 = vsel %vm375, %v484, 0
      %v491 = vsel %vm375, %v486, 0
      %493 = vmatprep.subr.bf16.mxu0 0
      %494 = vmatpush1.bf16.xpose.msra.mxu0 %v491
      %495 = vmatprep.subr.bf16.mxu0 0
      %496 = vmatpush1.bf16.xpose.msra.mxu0 0
      %497 = vmatprep.subr.bf16.mxu0 0
      %498 = vmatpush1.bf16.xpose.msra.mxu0 0
      %499 = vmatprep.subr.bf16.mxu0 0
      %500 = vmatpush1.bf16.xpose.msra.mxu0 0
      %501 = vmatprep.subr.bf16.mxu0 0
      %502 = vmatpush1.bf16.xpose.msra.mxu0 0
      %503 = vmatprep.subr.bf16.mxu0 0
      %504 = vmatpush1.bf16.xpose.msra.mxu0 0
      %505 = vmatprep.subr.bf16.mxu0 0
      %506 = vmatpush1.bf16.xpose.msra.mxu0 0
      %507 = vmatprep.subr.bf16.mxu0 0
      %508 = vmatpush1.bf16.xpose.msra.mxu0 0
      %509 = vmatprep.subr.bf16.mxu0 0
      %510 = vmatpush1.bf16.xpose.msra.mxu0 0
      %511 = vmatprep.subr.bf16.mxu0 0
      %512 = vmatpush1.bf16.xpose.msra.mxu0 0
      %513 = vmatprep.subr.bf16.mxu0 0
      %514 = vmatpush1.bf16.xpose.msra.mxu0 0
      %515 = vmatprep.subr.bf16.mxu0 0
      %516 = vmatpush1.bf16.xpose.msra.mxu0 0
      %517 = vmatprep.subr.bf16.mxu0 0
      %518 = vmatpush1.bf16.xpose.msra.mxu0 0
      %519 = vmatprep.subr.bf16.mxu0 0
      %520 = vmatpush1.bf16.xpose.msra.mxu0 0
      %521 = vmatprep.subr.bf16.mxu0 0
      %522 = vmatpush1.bf16.xpose.msra.mxu0 0
      %523 = vmatprep.subr.bf16.mxu0 0
      %524 = vmatpush1.bf16.xpose.msra.mxu0 0
      %525 = vmatprep.mubr.bf16.mxu0 0
      %526 = vmatmul.mubr.bf16.gmra.mrb[0].mxu0 %v488
      %v527 = vpop.f32.mrb[0].mxu0
      %v528 = vadd.f32 %v370, %v527
      %v529 = vpop.f32.mrb[0].mxu0
      %v530 = vpop.f32.mrb[0].mxu0
      %v531 = vpop.f32.mrb[0].mxu0
      %532 = vdwg.mxu0
      %v533 = vsel %vm375, %v528, -inf
      %534 = vmax.xlane.f32.xlu0 %v533
      %v535 = vpop.xlane.xlu0 %534
      %v536 = vsub.f32 %v528, %v535
      %v537 = vmul.f32 %v536, 1.442695
      %v538 = vpow.pop %v537
      %v539 = vsel %vm375, %v538, 0.0
      %540 = vadd.xlane.f32.xlu0 %v539
      %v541 = vpop.xlane.xlu0 %540
      %v542 = vrcp.pop %v541
      %v543 = vmul.f32 %v538, %v542
      %v544 = vpack.c.bf16 %v543, %v543
      %545 = vrot.lane.b32.xlu0 %v365, 56
      %v546 = vpop.permute.xlu0 %545
      %v548 = vsel %vm375, %v544, 0
      %v551 = vsel %vm439, %v546, 0
      %553 = vmatprep.subr.bf16.mxu0 0
      %554 = vmatpush1.bf16.msra.mxu0 %v551
      %555 = vmatprep.subr.bf16.mxu0 0
      %556 = vmatpush1.bf16.msra.mxu0 0
      %557 = vmatprep.subr.bf16.mxu0 0
      %558 = vmatpush1.bf16.msra.mxu0 0
      %559 = vmatprep.subr.bf16.mxu0 0
      %560 = vmatpush1.bf16.msra.mxu0 0
      %561 = vmatprep.subr.bf16.mxu0 0
      %562 = vmatpush1.bf16.msra.mxu0 0
      %563 = vmatprep.subr.bf16.mxu0 0
      %564 = vmatpush1.bf16.msra.mxu0 0
      %565 = vmatprep.subr.bf16.mxu0 0
      %566 = vmatpush1.bf16.msra.mxu0 0
      %567 = vmatprep.subr.bf16.mxu0 0
      %568 = vmatpush1.bf16.msra.mxu0 0
      %569 = vmatprep.subr.bf16.mxu0 0
      %570 = vmatpush1.bf16.msra.mxu0 0
      %571 = vmatprep.subr.bf16.mxu0 0
      %572 = vmatpush1.bf16.msra.mxu0 0
      %573 = vmatprep.subr.bf16.mxu0 0
      %574 = vmatpush1.bf16.msra.mxu0 0
      %575 = vmatprep.subr.bf16.mxu0 0
      %576 = vmatpush1.bf16.msra.mxu0 0
      %577 = vmatprep.subr.bf16.mxu0 0
      %578 = vmatpush1.bf16.msra.mxu0 0
      %579 = vmatprep.subr.bf16.mxu0 0
      %580 = vmatpush1.bf16.msra.mxu0 0
      %581 = vmatprep.subr.bf16.mxu0 0
      %582 = vmatpush1.bf16.msra.mxu0 0
      %583 = vmatprep.subr.bf16.mxu0 0
      %584 = vmatpush1.bf16.msra.mxu0 0
      %585 = vmatprep.mubr.bf16.mxu0 0
      %586 = vmatmul.mubr.bf16.gmra.mrb[0].mxu0 %v548
      %v587 = vpop.f32.mrb[0].mxu0
      %v588 = vadd.f32 0.0, %v587
      %v589 = vpop.f32.mrb[0].mxu0
      %v590 = vpop.f32.mrb[0].mxu0
      %v591 = vpop.f32.mrb[0].mxu0
      %592 = vdwg.mxu0
      %593 = vrot.lane.b32.xlu0 %v365, 112
      %v594 = vpop.permute.xlu0 %593
      %595 = vrot.lane.b32.xlu0 %v365, 80
      %v596 = vpop.permute.xlu0 %595
      %v598 = vsel %vm375, %v594, 0
      %v601 = vsel %vm375, %v596, 0
      %603 = vmatprep.subr.bf16.mxu0 0
      %604 = vmatpush1.bf16.xpose.msra.mxu0 %v601
      %605 = vmatprep.subr.bf16.mxu0 0
      %606 = vmatpush1.bf16.xpose.msra.mxu0 0
      %607 = vmatprep.subr.bf16.mxu0 0
      %608 = vmatpush1.bf16.xpose.msra.mxu0 0
      %609 = vmatprep.subr.bf16.mxu0 0
      %610 = vmatpush1.bf16.xpose.msra.mxu0 0
      %611 = vmatprep.subr.bf16.mxu0 0
      %612 = vmatpush1.bf16.xpose.msra.mxu0 0
      %613 = vmatprep.subr.bf16.mxu0 0
      %614 = vmatpush1.bf16.xpose.msra.mxu0 0
      %615 = vmatprep.subr.bf16.mxu0 0
      %616 = vmatpush1.bf16.xpose.msra.mxu0 0
      %617 = vmatprep.subr.bf16.mxu0 0
      %618 = vmatpush1.bf16.xpose.msra.mxu0 0
      %619 = vmatprep.subr.bf16.mxu0 0
      %620 = vmatpush1.bf16.xpose.msra.mxu0 0
      %621 = vmatprep.subr.bf16.mxu0 0
      %622 = vmatpush1.bf16.xpose.msra.mxu0 0
      %623 = vmatprep.subr.bf16.mxu0 0
      %624 = vmatpush1.bf16.xpose.msra.mxu0 0
      %625 = vmatprep.subr.bf16.mxu0 0
      %626 = vmatpush1.bf16.xpose.msra.mxu0 0
      %627 = vmatprep.subr.bf16.mxu0 0
      %628 = vmatpush1.bf16.xpose.msra.mxu0 0
      %629 = vmatprep.subr.bf16.mxu0 0
      %630 = vmatpush1.bf16.xpose.msra.mxu0 0
      %631 = vmatprep.subr.bf16.mxu0 0
      %632 = vmatpush1.bf16.xpose.msra.mxu0 0
      %633 = vmatprep.subr.bf16.mxu0 0
      %634 = vmatpush1.bf16.xpose.msra.mxu0 0
      %635 = vmatprep.mubr.bf16.mxu0 0
      %636 = vmatmul.mubr.bf16.gmra.mrb[0].mxu0 %v598
      %v637 = vpop.f32.mrb[0].mxu0
      %v638 = vadd.f32 %v370, %v637
      %v639 = vpop.f32.mrb[0].mxu0
      %v640 = vpop.f32.mrb[0].mxu0
      %v641 = vpop.f32.mrb[0].mxu0
      %642 = vdwg.mxu0
      %v643 = vsel %vm375, %v638, -inf
      %644 = vmax.xlane.f32.xlu0 %v643
      %v645 = vpop.xlane.xlu0 %644
      %v646 = vsub.f32 %v638, %v645
      %v647 = vmul.f32 %v646, 1.442695
      %v648 = vpow.pop %v647
      %v649 = vsel %vm375, %v648, 0.0
      %650 = vadd.xlane.f32.xlu0 %v649
      %v651 = vpop.xlane.xlu0 %650
      %v652 = vrcp.pop %v651
      %v653 = vmul.f32 %v648, %v652
      %v654 = vpack.c.bf16 %v653, %v653
      %655 = vrot.lane.b32.xlu0 %v365, 48
      %v656 = vpop.permute.xlu0 %655
      %v658 = vsel %vm375, %v654, 0
      %v661 = vsel %vm439, %v656, 0
      %663 = vmatprep.subr.bf16.mxu0 0
      %664 = vmatpush1.bf16.msra.mxu0 %v661
      %665 = vmatprep.subr.bf16.mxu0 0
      %666 = vmatpush1.bf16.msra.mxu0 0
      %667 = vmatprep.subr.bf16.mxu0 0
      %668 = vmatpush1.bf16.msra.mxu0 0
      %669 = vmatprep.subr.bf16.mxu0 0
      %670 = vmatpush1.bf16.msra.mxu0 0
      %671 = vmatprep.subr.bf16.mxu0 0
      %672 = vmatpush1.bf16.msra.mxu0 0
      %673 = vmatprep.subr.bf16.mxu0 0
      %674 = vmatpush1.bf16.msra.mxu0 0
      %675 = vmatprep.subr.bf16.mxu0 0
      %676 = vmatpush1.bf16.msra.mxu0 0
      %677 = vmatprep.subr.bf16.mxu0 0
      %678 = vmatpush1.bf16.msra.mxu0 0
      %679 = vmatprep.subr.bf16.mxu0 0
      %680 = vmatpush1.bf16.msra.mxu0 0
      %681 = vmatprep.subr.bf16.mxu0 0
      %682 = vmatpush1.bf16.msra.mxu0 0
      %683 = vmatprep.subr.bf16.mxu0 0
      %684 = vmatpush1.bf16.msra.mxu0 0
      %685 = vmatprep.subr.bf16.mxu0 0
      %686 = vmatpush1.bf16.msra.mxu0 0
      %687 = vmatprep.subr.bf16.mxu0 0
      %688 = vmatpush1.bf16.msra.mxu0 0
      %689 = vmatprep.subr.bf16.mxu0 0
      %690 = vmatpush1.bf16.msra.mxu0 0
      %691 = vmatprep.subr.bf16.mxu0 0
      %692 = vmatpush1.bf16.msra.mxu0 0
      %693 = vmatprep.subr.bf16.mxu0 0
      %694 = vmatpush1.bf16.msra.mxu0 0
      %695 = vmatprep.mubr.bf16.mxu0 0
      %696 = vmatmul.mubr.bf16.gmra.mrb[0].mxu0 %v658
      %v697 = vpop.f32.mrb[0].mxu0
      %v698 = vadd.f32 0.0, %v697
      %v699 = vpop.f32.mrb[0].mxu0
      %v700 = vpop.f32.mrb[0].mxu0
      %v701 = vpop.f32.mrb[0].mxu0
      %702 = vdwg.mxu0
      %703 = vrot.lane.b32.xlu0 %v365, 104
      %v704 = vpop.permute.xlu0 %703
      %705 = vrot.lane.b32.xlu0 %v365, 72
      %v706 = vpop.permute.xlu0 %705
      %v708 = vsel %vm375, %v704, 0
      %v711 = vsel %vm375, %v706, 0
      %713 = vmatprep.subr.bf16.mxu0 0
      %714 = vmatpush1.bf16.xpose.msra.mxu0 %v711
      %715 = vmatprep.subr.bf16.mxu0 0
      %716 = vmatpush1.bf16.xpose.msra.mxu0 0
      %717 = vmatprep.subr.bf16.mxu0 0
      %718 = vmatpush1.bf16.xpose.msra.mxu0 0
      %719 = vmatprep.subr.bf16.mxu0 0
      %720 = vmatpush1.bf16.xpose.msra.mxu0 0
      %721 = vmatprep.subr.bf16.mxu0 0
      %722 = vmatpush1.bf16.xpose.msra.mxu0 0
      %723 = vmatprep.subr.bf16.mxu0 0
      %724 = vmatpush1.bf16.xpose.msra.mxu0 0
      %725 = vmatprep.subr.bf16.mxu0 0
      %726 = vmatpush1.bf16.xpose.msra.mxu0 0
      %727 = vmatprep.subr.bf16.mxu0 0
      %728 = vmatpush1.bf16.xpose.msra.mxu0 0
      %729 = vmatprep.subr.bf16.mxu0 0
      %730 = vmatpush1.bf16.xpose.msra.mxu0 0
      %731 = vmatprep.subr.bf16.mxu0 0
      %732 = vmatpush1.bf16.xpose.msra.mxu0 0
      %733 = vmatprep.subr.bf16.mxu0 0
      %734 = vmatpush1.bf16.xpose.msra.mxu0 0
      %735 = vmatprep.subr.bf16.mxu0 0
      %736 = vmatpush1.bf16.xpose.msra.mxu0 0
      %737 = vmatprep.subr.bf16.mxu0 0
      %738 = vmatpush1.bf16.xpose.msra.mxu0 0
      %739 = vmatprep.subr.bf16.mxu0 0
      %740 = vmatpush1.bf16.xpose.msra.mxu0 0
      %741 = vmatprep.subr.bf16.mxu0 0
      %742 = vmatpush1.bf16.xpose.msra.mxu0 0
      %743 = vmatprep.subr.bf16.mxu0 0
      %744 = vmatpush1.bf16.xpose.msra.mxu0 0
      %745 = vmatprep.mubr.bf16.mxu0 0
      %746 = vmatmul.mubr.bf16.gmra.mrb[0].mxu0 %v708
      %v747 = vpop.f32.mrb[0].mxu0
      %v748 = vadd.f32 %v370, %v747
      %v749 = vpop.f32.mrb[0].mxu0
      %v750 = vpop.f32.mrb[0].mxu0
      %v751 = vpop.f32.mrb[0].mxu0
      %752 = vdwg.mxu0
      %v753 = vsel %vm375, %v748, -inf
      %754 = vmax.xlane.f32.xlu0 %v753
      %v755 = vpop.xlane.xlu0 %754
      %v756 = vsub.f32 %v748, %v755
      %v757 = vmul.f32 %v756, 1.442695
      %v758 = vpow.pop %v757
      %v759 = vsel %vm375, %v758, 0.0
      %760 = vadd.xlane.f32.xlu0 %v759
      %v761 = vpop.xlane.xlu0 %760
      %v762 = vrcp.pop %v761
      %v763 = vmul.f32 %v758, %v762
      %v764 = vpack.c.bf16 %v763, %v763
      %765 = vrot.lane.b32.xlu0 %v365, 40
      %v766 = vpop.permute.xlu0 %765
      %v768 = vsel %vm375, %v764, 0
      %v771 = vsel %vm439, %v766, 0
      %773 = vmatprep.subr.bf16.mxu0 0
      %774 = vmatpush1.bf16.msra.mxu0 %v771
      %775 = vmatprep.subr.bf16.mxu0 0
      %776 = vmatpush1.bf16.msra.mxu0 0
      %777 = vmatprep.subr.bf16.mxu0 0
      %778 = vmatpush1.bf16.msra.mxu0 0
      %779 = vmatprep.subr.bf16.mxu0 0
      %780 = vmatpush1.bf16.msra.mxu0 0
      %781 = vmatprep.subr.bf16.mxu0 0
      %782 = vmatpush1.bf16.msra.mxu0 0
      %783 = vmatprep.subr.bf16.mxu0 0
      %784 = vmatpush1.bf16.msra.mxu0 0
      %785 = vmatprep.subr.bf16.mxu0 0
      %786 = vmatpush1.bf16.msra.mxu0 0
      %787 = vmatprep.subr.bf16.mxu0 0
      %788 = vmatpush1.bf16.msra.mxu0 0
      %789 = vmatprep.subr.bf16.mxu0 0
      %790 = vmatpush1.bf16.msra.mxu0 0
      %791 = vmatprep.subr.bf16.mxu0 0
      %792 = vmatpush1.bf16.msra.mxu0 0
      %793 = vmatprep.subr.bf16.mxu0 0
      %794 = vmatpush1.bf16.msra.mxu0 0
      %795 = vmatprep.subr.bf16.mxu0 0
      %796 = vmatpush1.bf16.msra.mxu0 0
      %797 = vmatprep.subr.bf16.mxu0 0
      %798 = vmatpush1.bf16.msra.mxu0 0
      %799 = vmatprep.subr.bf16.mxu0 0
      %800 = vmatpush1.bf16.msra.mxu0 0
      %801 = vmatprep.subr.bf16.mxu0 0
      %802 = vmatpush1.bf16.msra.mxu0 0
      %803 = vmatprep.subr.bf16.mxu0 0
      %804 = vmatpush1.bf16.msra.mxu0 0
      %805 = vmatprep.mubr.bf16.mxu0 0
      %806 = vmatmul.mubr.bf16.gmra.mrb[0].mxu0 %v768
      %v807 = vpop.f32.mrb[0].mxu0
      %v808 = vadd.f32 0.0, %v807
      %v809 = vpop.f32.mrb[0].mxu0
      %v810 = vpop.f32.mrb[0].mxu0
      %v811 = vpop.f32.mrb[0].mxu0
      %812 = vdwg.mxu0
      %814 = vrot.lane.b32.xlu0 %v588, 8
      %v815 = vpop.permute.xlu0 %814
      %818 = vrot.lane.b32.xlu0 %v698, 16
      %v819 = vpop.permute.xlu0 %818
      %822 = vrot.lane.b32.xlu0 %v808, 24
      %v823 = vpop.permute.xlu0 %822
      %v825 = vsel %vm375, %v478, %v815
      %vm826 = vcmask 130048
      %v827 = vsel %vm826, %v825, %v819
      %vm828 = vcmask 195584
      %v829 = vsel %vm828, %v827, %v823
      %v830 = vpack.c.bf16 %v829, %v829
      %v831 = vld [vmem:[%s2 + $0x3] sm:$0x1]
      %v832 = vlaneseq
      %v833 = vshrl.u32 %v832, 7
      %v834 = vsub.s32 0, %v833
      %v835 = vrot.slane %v831, %v834
      %836 = vrot.lane.b32.xlu0 %v318, 32
      %v837 = vpop.permute.xlu0 %836
      %838 = vrot.lane.b32.xlu0 %v319, 32
      %v839 = vpop.permute.xlu0 %838
      %v843 = vsel %vm265, %v830, 0
      %845 = vmatprep.subr.bf16.mxu0 0
      %846 = vmatpush1.bf16.msra.mxu0 %v837
      %847 = vmatprep.subr.bf16.mxu0 0
      %848 = vmatpush1.bf16.msra.mxu0 %v839
      %849 = vmatprep.subr.bf16.mxu0 0
      %850 = vmatpush1.bf16.msra.mxu0 0
      %851 = vmatprep.subr.bf16.mxu0 0
      %852 = vmatpush1.bf16.msra.mxu0 0
      %853 = vmatprep.subr.bf16.mxu0 0
      %854 = vmatpush1.bf16.msra.mxu0 0
      %855 = vmatprep.subr.bf16.mxu0 0
      %856 = vmatpush1.bf16.msra.mxu0 0
      %857 = vmatprep.subr.bf16.mxu0 0
      %858 = vmatpush1.bf16.msra.mxu0 0
      %859 = vmatprep.subr.bf16.mxu0 0
      %860 = vmatpush1.bf16.msra.mxu0 0
      %861 = vmatprep.subr.bf16.mxu0 0
      %862 = vmatpush1.bf16.msra.mxu0 0
      %863 = vmatprep.subr.bf16.mxu0 0
      %864 = vmatpush1.bf16.msra.mxu0 0
      %865 = vmatprep.subr.bf16.mxu0 0
      %866 = vmatpush1.bf16.msra.mxu0 0
      %867 = vmatprep.subr.bf16.mxu0 0
      %868 = vmatpush1.bf16.msra.mxu0 0
      %869 = vmatprep.subr.bf16.mxu0 0
      %870 = vmatpush1.bf16.msra.mxu0 0
      %871 = vmatprep.subr.bf16.mxu0 0
      %872 = vmatpush1.bf16.msra.mxu0 0
      %873 = vmatprep.subr.bf16.mxu0 0
      %874 = vmatpush1.bf16.msra.mxu0 0
      %875 = vmatprep.subr.bf16.mxu0 0
      %876 = vmatpush1.bf16.msra.mxu0 0
      %877 = vmatprep.mubr.bf16.mxu0 0
      %878 = vmatmul.mubr.bf16.gmra.mrb[0].mxu0 %v843
      %v879 = vpop.f32.mrb[0].mxu0
      %v880 = vadd.f32 %v835, %v879
      %v881 = vpop.f32.mrb[0].mxu0
      %v882 = vpop.f32.mrb[0].mxu0
      %v883 = vpop.f32.mrb[0].mxu0
      %884 = vdwg.mxu0
      %v885 = vadd.f32 %v291, %v880
      %v886 = vsel %vm265, %v885, 0.0
      %887 = vadd.xlane.f32.xlu0 %v886
      %v888 = vpop.xlane.xlu0 %887
      %v889 = vmul.f32 %v888, %v269
      %v890 = vsub.f32 %v885, %v889
      %v891 = vmul.f32 %v890, %v890
      %v892 = vsel %vm265, %v891, 0.0
      %893 = vadd.xlane.f32.xlu0 %v892
      %v894 = vpop.xlane.xlu0 %893
      %v895 = vmul.f32 %v894, %v269
      %v896 = vadd.f32 %v895, 1e-05
      %v897 = vrsqrt.pop %v896
      %v898 = vmul.f32 %v890, %v897
      %v899 = vld [vmem:[%s2 + $0x4] sm:$0x1]
      %v900 = vlaneseq
      %v901 = vshrl.u32 %v900, 7
      %v902 = vsub.s32 0, %v901
      %v903 = vrot.slane %v899, %v902
      %v904 = vmul.f32 %v898, %v903
      %v905 = vld [vmem:[%s2 + $0x5] sm:$0x1]
      %v906 = vlaneseq
      %v907 = vshrl.u32 %v906, 7
      %v908 = vsub.s32 0, %v907
      %v909 = vrot.slane %v905, %v908
      %v910 = vadd.f32 %v904, %v909
      %v911 = vpack.c.bf16 %v910, %v910
      %v912 = vld [vmem:[%s2 + $0x6] sm:$0x1]
      %v913 = vlaneseq
      %v914 = vshrl.u32 %v913, 7
      %v915 = vsub.s32 0, %v914
      %v916 = vrot.slane %v912, %v915
      %v917 = vunpack.c.h.b16 %v292
      %v918 = vunpack.c.h.b16 %v293
      %v919 = vunpack.c.h.b16 %v294
      %v920 = vunpack.c.h.b16 %v295
      %v921 = vpack.c.b16 %v918, %v917
      %v922 = vpack.c.b16 %v920, %v919
      %v926 = vsel %vm265, %v911, 0
      %928 = vmatprep.subr.bf16.mxu0 0
      %929 = vmatpush1.bf16.msra.mxu0 %v921
      %930 = vmatprep.subr.bf16.mxu0 0
      %931 = vmatpush1.bf16.msra.mxu0 %v922
      %932 = vmatprep.subr.bf16.mxu0 0
      %933 = vmatpush1.bf16.msra.mxu0 0
      %934 = vmatprep.subr.bf16.mxu0 0
      %935 = vmatpush1.bf16.msra.mxu0 0
      %936 = vmatprep.subr.bf16.mxu0 0
      %937 = vmatpush1.bf16.msra.mxu0 0
      %938 = vmatprep.subr.bf16.mxu0 0
      %939 = vmatpush1.bf16.msra.mxu0 0
      %940 = vmatprep.subr.bf16.mxu0 0
      %941 = vmatpush1.bf16.msra.mxu0 0
      %942 = vmatprep.subr.bf16.mxu0 0
      %943 = vmatpush1.bf16.msra.mxu0 0
      %944 = vmatprep.subr.bf16.mxu0 0
      %945 = vmatpush1.bf16.msra.mxu0 0
      %946 = vmatprep.subr.bf16.mxu0 0
      %947 = vmatpush1.bf16.msra.mxu0 0
      %948 = vmatprep.subr.bf16.mxu0 0
      %949 = vmatpush1.bf16.msra.mxu0 0
      %950 = vmatprep.subr.bf16.mxu0 0
      %951 = vmatpush1.bf16.msra.mxu0 0
      %952 = vmatprep.subr.bf16.mxu0 0
      %953 = vmatpush1.bf16.msra.mxu0 0
      %954 = vmatprep.subr.bf16.mxu0 0
      %955 = vmatpush1.bf16.msra.mxu0 0
      %956 = vmatprep.subr.bf16.mxu0 0
      %957 = vmatpush1.bf16.msra.mxu0 0
      %958 = vmatprep.subr.bf16.mxu0 0
      %959 = vmatpush1.bf16.msra.mxu0 0
      %960 = vmatprep.mubr.bf16.mxu0 0
      %961 = vmatmul.mubr.bf16.gmra.mrb[0].mxu0 %v926
      %v962 = vpop.f32.mrb[0].mxu0
      %v963 = vadd.f32 %v916, %v962
      %v964 = vpop.f32.mrb[0].mxu0
      %v965 = vpop.f32.mrb[0].mxu0
      %v966 = vpop.f32.mrb[0].mxu0
      %967 = vdwg.mxu0
      %v968 = vmul.f32 %v963, 0.5
      %v969 = vmul.f32 %v963, 0.044715
      %v970 = vmul.f32 %v969, %v963
      %v971 = vmul.f32 %v970, %v963
      %v972 = vadd.f32 %v963, %v971
      %v973 = vmul.f32 %v972, 0.7978846
      %v974 = vtanh.pop %v973
      %v975 = vadd.f32 %v974, 1.0
      %v976 = vmul.f32 %v968, %v975
      %v977 = vpack.c.bf16 %v976, %v976
      %v978 = vld [vmem:[%s2 + $0x7] sm:$0x1]
      %v979 = vlaneseq
      %v980 = vshrl.u32 %v979, 7
      %v981 = vsub.s32 0, %v980
      %v982 = vrot.slane %v978, %v981
      %v991 = vunpack.c.l.b16 %v296
      %v992 = vunpack.c.l.b16 %v297
      %v993 = vunpack.c.l.b16 %v298
      %v994 = vunpack.c.l.b16 %v299
      %v995 = vunpack.c.l.b16 %v300
      %v996 = vunpack.c.l.b16 %v301
      %v997 = vunpack.c.l.b16 %v302
      %v998 = vunpack.c.l.b16 %v303
      %v999 = vpack.c.b16 %v992, %v991
      %v1000 = vpack.c.b16 %v994, %v993
      %v1001 = vpack.c.b16 %v996, %v995
      %v1002 = vpack.c.b16 %v998, %v997
      %vm1007 = vcmask 523264
      %v1009 = vsel %vm1007, %v977, 0
      %1011 = vmatprep.subr.bf16.mxu0 0
      %1012 = vmatpush1.bf16.msra.mxu0 %v999
      %1013 = vmatprep.subr.bf16.mxu0 0
      %1014 = vmatpush1.bf16.msra.mxu0 %v1000
      %1015 = vmatprep.subr.bf16.mxu0 0
      %1016 = vmatpush1.bf16.msra.mxu0 %v1001
      %1017 = vmatprep.subr.bf16.mxu0 0
      %1018 = vmatpush1.bf16.msra.mxu0 %v1002
      %1019 = vmatprep.subr.bf16.mxu0 0
      %1020 = vmatpush1.bf16.msra.mxu0 0
      %1021 = vmatprep.subr.bf16.mxu0 0
      %1022 = vmatpush1.bf16.msra.mxu0 0
      %1023 = vmatprep.subr.bf16.mxu0 0
      %1024 = vmatpush1.bf16.msra.mxu0 0
      %1025 = vmatprep.subr.bf16.mxu0 0
      %1026 = vmatpush1.bf16.msra.mxu0 0
      %1027 = vmatprep.subr.bf16.mxu0 0
      %1028 = vmatpush1.bf16.msra.mxu0 0
      %1029 = vmatprep.subr.bf16.mxu0 0
      %1030 = vmatpush1.bf16.msra.mxu0 0
      %1031 = vmatprep.subr.bf16.mxu0 0
      %1032 = vmatpush1.bf16.msra.mxu0 0
      %1033 = vmatprep.subr.bf16.mxu0 0
      %1034 = vmatpush1.bf16.msra.mxu0 0
      %1035 = vmatprep.subr.bf16.mxu0 0
      %1036 = vmatpush1.bf16.msra.mxu0 0
      %1037 = vmatprep.subr.bf16.mxu0 0
      %1038 = vmatpush1.bf16.msra.mxu0 0
      %1039 = vmatprep.subr.bf16.mxu0 0
      %1040 = vmatpush1.bf16.msra.mxu0 0
      %1041 = vmatprep.subr.bf16.mxu0 0
      %1042 = vmatpush1.bf16.msra.mxu0 0
      %1043 = vmatprep.mubr.bf16.mxu0 0
      %1044 = vmatmul.mubr.bf16.gmra.mrb[0].mxu0 %v1009
      %v1045 = vpop.f32.mrb[0].mxu0
      %v1046 = vadd.f32 %v982, %v1045
      %v1047 = vpop.f32.mrb[0].mxu0
      %v1048 = vpop.f32.mrb[0].mxu0
      %v1049 = vpop.f32.mrb[0].mxu0
      %1050 = vdwg.mxu0
      %v1051 = vadd.f32 %v910, %v1046
      %v1052 = vsel %vm265, %v1051, 0.0
      %1053 = vadd.xlane.f32.xlu0 %v1052
      %v1054 = vpop.xlane.xlu0 %1053
      %v1055 = vmul.f32 %v1054, %v269
      %v1056 = vsub.f32 %v1051, %v1055
      %v1057 = vmul.f32 %v1056, %v1056
      %v1058 = vsel %vm265, %v1057, 0.0
      %1059 = vadd.xlane.f32.xlu0 %v1058
      %v1060 = vpop.xlane.xlu0 %1059
      %v1061 = vmul.f32 %v1060, %v269
      %v1062 = vadd.f32 %v1061, 1e-05
      %v1063 = vrsqrt.pop %v1062
      %v1064 = vmul.f32 %v1056, %v1063
      %v1065 = vld [vmem:[%s2 + $0x8] sm:$0x1]
      %v1066 = vlaneseq
      %v1067 = vshrl.u32 %v1066, 7
      %v1068 = vsub.s32 0, %v1067
      %v1069 = vrot.slane %v1065, %v1068
      %v1070 = vmul.f32 %v1064, %v1069
      %v1071 = vld [vmem:[%s2 + $0x9] sm:$0x1]
      %v1072 = vlaneseq
      %v1073 = vshrl.u32 %v1072, 7
      %v1074 = vsub.s32 0, %v1073
      %v1075 = vrot.slane %v1071, %v1074
      %v1076 = vadd.f32 %v1070, %v1075
      %s1077 = scalar_lea.vmem %s3, 32
      %v1078 = vld [vmem:[%s1077] sm:$0xff]
      %v1079 = vld [vmem:[%s1077 + $0x8] sm:$0xff]
      %v1080 = vld [vmem:[%s1077 + $0x10] sm:$0xff]
      %v1081 = vld [vmem:[%s1077 + $0x18] sm:$0xff]
      %s1082 = scalar_lea.vmem %s4, 32
      %v1083 = vld [vmem:[%s1082] sm:$0xf]
      %v1084 = vld [vmem:[%s1082 + $0x4] sm:$0xf]
      %v1085 = vld [vmem:[%s1082 + $0x8] sm:$0xf]
      %v1086 = vld [vmem:[%s1082 + $0xc] sm:$0xf]
      %v1087 = vld [vmem:[%s1082 + $0x10] sm:$0xf]
      %v1088 = vld [vmem:[%s1082 + $0x14] sm:$0xf]
      %v1089 = vld [vmem:[%s1082 + $0x18] sm:$0xf]
      %v1090 = vld [vmem:[%s1082 + $0x1c] sm:$0xf]
      %v1091 = vpack.c.bf16 %v1076, %v1076
      %v1092 = vld [vmem:[%s2 + $0xa] sm:$0x1]
      %v1093 = vlaneseq
      %v1094 = vshrl.u32 %v1093, 7
      %v1095 = vsub.s32 0, %v1094
      %v1096 = vrot.slane %v1092, %v1095
      %v1101 = vunpack.c.l.b16 %v1078
      %v1102 = vunpack.c.l.b16 %v1079
      %v1103 = vunpack.c.l.b16 %v1080
      %v1104 = vunpack.c.l.b16 %v1081
      %v1105 = vpack.c.b16 %v1102, %v1101
      %v1106 = vpack.c.b16 %v1104, %v1103
      %v1110 = vsel %vm265, %v1091, 0
      %1112 = vmatprep.subr.bf16.mxu0 0
      %1113 = vmatpush1.bf16.msra.mxu0 %v1105
      %1114 = vmatprep.subr.bf16.mxu0 0
      %1115 = vmatpush1.bf16.msra.mxu0 %v1106
      %1116 = vmatprep.subr.bf16.mxu0 0
      %1117 = vmatpush1.bf16.msra.mxu0 0
      %1118 = vmatprep.subr.bf16.mxu0 0
      %1119 = vmatpush1.bf16.msra.mxu0 0
      %1120 = vmatprep.subr.bf16.mxu0 0
      %1121 = vmatpush1.bf16.msra.mxu0 0
      %1122 = vmatprep.subr.bf16.mxu0 0
      %1123 = vmatpush1.bf16.msra.mxu0 0
      %1124 = vmatprep.subr.bf16.mxu0 0
      %1125 = vmatpush1.bf16.msra.mxu0 0
      %1126 = vmatprep.subr.bf16.mxu0 0
      %1127 = vmatpush1.bf16.msra.mxu0 0
      %1128 = vmatprep.subr.bf16.mxu0 0
      %1129 = vmatpush1.bf16.msra.mxu0 0
      %1130 = vmatprep.subr.bf16.mxu0 0
      %1131 = vmatpush1.bf16.msra.mxu0 0
      %1132 = vmatprep.subr.bf16.mxu0 0
      %1133 = vmatpush1.bf16.msra.mxu0 0
      %1134 = vmatprep.subr.bf16.mxu0 0
      %1135 = vmatpush1.bf16.msra.mxu0 0
      %1136 = vmatprep.subr.bf16.mxu0 0
      %1137 = vmatpush1.bf16.msra.mxu0 0
      %1138 = vmatprep.subr.bf16.mxu0 0
      %1139 = vmatpush1.bf16.msra.mxu0 0
      %1140 = vmatprep.subr.bf16.mxu0 0
      %1141 = vmatpush1.bf16.msra.mxu0 0
      %1142 = vmatprep.subr.bf16.mxu0 0
      %1143 = vmatpush1.bf16.msra.mxu0 0
      %1144 = vmatprep.mubr.bf16.mxu0 0
      %1145 = vmatmul.mubr.bf16.gmra.mrb[0].mxu0 %v1110
      %v1146 = vpop.f32.mrb[0].mxu0
      %v1147 = vadd.f32 %v1096, %v1146
      %v1148 = vpop.f32.mrb[0].mxu0
      %v1149 = vpop.f32.mrb[0].mxu0
      %v1150 = vpop.f32.mrb[0].mxu0
      %1151 = vdwg.mxu0
      %v1152 = vpack.c.bf16 %v1147, %v1147
      %1154 = vrot.lane.b32.xlu0 %v1152, 96
      %v1155 = vpop.permute.xlu0 %1154
      %v1157 = vsel %vm375, %v1152, 0
      %v1160 = vsel %vm375, %v1155, 0
      %1162 = vmatprep.subr.bf16.mxu0 0
      %1163 = vmatpush1.bf16.xpose.msra.mxu0 %v1160
      %1164 = vmatprep.subr.bf16.mxu0 0
      %1165 = vmatpush1.bf16.xpose.msra.mxu0 0
      %1166 = vmatprep.subr.bf16.mxu0 0
      %1167 = vmatpush1.bf16.xpose.msra.mxu0 0
      %1168 = vmatprep.subr.bf16.mxu0 0
      %1169 = vmatpush1.bf16.xpose.msra.mxu0 0
      %1170 = vmatprep.subr.bf16.mxu0 0
      %1171 = vmatpush1.bf16.xpose.msra.mxu0 0
      %1172 = vmatprep.subr.bf16.mxu0 0
      %1173 = vmatpush1.bf16.xpose.msra.mxu0 0
      %1174 = vmatprep.subr.bf16.mxu0 0
      %1175 = vmatpush1.bf16.xpose.msra.mxu0 0
      %1176 = vmatprep.subr.bf16.mxu0 0
      %1177 = vmatpush1.bf16.xpose.msra.mxu0 0
      %1178 = vmatprep.subr.bf16.mxu0 0
      %1179 = vmatpush1.bf16.xpose.msra.mxu0 0
      %1180 = vmatprep.subr.bf16.mxu0 0
      %1181 = vmatpush1.bf16.xpose.msra.mxu0 0
      %1182 = vmatprep.subr.bf16.mxu0 0
      %1183 = vmatpush1.bf16.xpose.msra.mxu0 0
      %1184 = vmatprep.subr.bf16.mxu0 0
      %1185 = vmatpush1.bf16.xpose.msra.mxu0 0
      %1186 = vmatprep.subr.bf16.mxu0 0
      %1187 = vmatpush1.bf16.xpose.msra.mxu0 0
      %1188 = vmatprep.subr.bf16.mxu0 0
      %1189 = vmatpush1.bf16.xpose.msra.mxu0 0
      %1190 = vmatprep.subr.bf16.mxu0 0
      %1191 = vmatpush1.bf16.xpose.msra.mxu0 0
      %1192 = vmatprep.subr.bf16.mxu0 0
      %1193 = vmatpush1.bf16.xpose.msra.mxu0 0
      %1194 = vmatprep.mubr.bf16.mxu0 0
      %1195 = vmatmul.mubr.bf16.gmra.mrb[0].mxu0 %v1157
      %v1196 = vpop.f32.mrb[0].mxu0
      %v1197 = vadd.f32 %v370, %v1196
      %v1198 = vpop.f32.mrb[0].mxu0
      %v1199 = vpop.f32.mrb[0].mxu0
      %v1200 = vpop.f32.mrb[0].mxu0
      %1201 = vdwg.mxu0
      %v1202 = vsel %vm375, %v1197, -inf
      %1203 = vmax.xlane.f32.xlu0 %v1202
      %v1204 = vpop.xlane.xlu0 %1203
      %v1205 = vsub.f32 %v1197, %v1204
      %v1206 = vmul.f32 %v1205, 1.442695
      %v1207 = vpow.pop %v1206
      %v1208 = vsel %vm375, %v1207, 0.0
      %1209 = vadd.xlane.f32.xlu0 %v1208
      %v1210 = vpop.xlane.xlu0 %1209
      %v1211 = vrcp.pop %v1210
      %v1212 = vmul.f32 %v1207, %v1211
      %v1213 = vpack.c.bf16 %v1212, %v1212
      %1214 = vrot.lane.b32.xlu0 %v1152, 64
      %v1215 = vpop.permute.xlu0 %1214
      %v1217 = vsel %vm375, %v1213, 0
      %v1220 = vsel %vm439, %v1215, 0
      %1222 = vmatprep.subr.bf16.mxu0 0
      %1223 = vmatpush1.bf16.msra.mxu0 %v1220
      %1224 = vmatprep.subr.bf16.mxu0 0
      %1225 = vmatpush1.bf16.msra.mxu0 0
      %1226 = vmatprep.subr.bf16.mxu0 0
      %1227 = vmatpush1.bf16.msra.mxu0 0
      %1228 = vmatprep.subr.bf16.mxu0 0
      %1229 = vmatpush1.bf16.msra.mxu0 0
      %1230 = vmatprep.subr.bf16.mxu0 0
      %1231 = vmatpush1.bf16.msra.mxu0 0
      %1232 = vmatprep.subr.bf16.mxu0 0
      %1233 = vmatpush1.bf16.msra.mxu0 0
      %1234 = vmatprep.subr.bf16.mxu0 0
      %1235 = vmatpush1.bf16.msra.mxu0 0
      %1236 = vmatprep.subr.bf16.mxu0 0
      %1237 = vmatpush1.bf16.msra.mxu0 0
      %1238 = vmatprep.subr.bf16.mxu0 0
      %1239 = vmatpush1.bf16.msra.mxu0 0
      %1240 = vmatprep.subr.bf16.mxu0 0
      %1241 = vmatpush1.bf16.msra.mxu0 0
      %1242 = vmatprep.subr.bf16.mxu0 0
      %1243 = vmatpush1.bf16.msra.mxu0 0
      %1244 = vmatprep.subr.bf16.mxu0 0
      %1245 = vmatpush1.bf16.msra.mxu0 0
      %1246 = vmatprep.subr.bf16.mxu0 0
      %1247 = vmatpush1.bf16.msra.mxu0 0
      %1248 = vmatprep.subr.bf16.mxu0 0
      %1249 = vmatpush1.bf16.msra.mxu0 0
      %1250 = vmatprep.subr.bf16.mxu0 0
      %1251 = vmatpush1.bf16.msra.mxu0 0
      %1252 = vmatprep.subr.bf16.mxu0 0
      %1253 = vmatpush1.bf16.msra.mxu0 0
      %1254 = vmatprep.mubr.bf16.mxu0 0
      %1255 = vmatmul.mubr.bf16.gmra.mrb[0].mxu0 %v1217
      %v1256 = vpop.f32.mrb[0].mxu0
      %v1257 = vadd.f32 0.0, %v1256
      %v1258 = vpop.f32.mrb[0].mxu0
      %v1259 = vpop.f32.mrb[0].mxu0
      %v1260 = vpop.f32.mrb[0].mxu0
      %1261 = vdwg.mxu0
      %1262 = vrot.lane.b32.xlu0 %v1152, 120
      %v1263 = vpop.permute.xlu0 %1262
      %1264 = vrot.lane.b32.xlu0 %v1152, 88
      %v1265 = vpop.permute.xlu0 %1264
      %v1267 = vsel %vm375, %v1263, 0
      %v1270 = vsel %vm375, %v1265, 0
      %1272 = vmatprep.subr.bf16.mxu0 0
      %1273 = vmatpush1.bf16.xpose.msra.mxu0 %v1270
      %1274 = vmatprep.subr.bf16.mxu0 0
      %1275 = vmatpush1.bf16.xpose.msra.mxu0 0
      %1276 = vmatprep.subr.bf16.mxu0 0
      %1277 = vmatpush1.bf16.xpose.msra.mxu0 0
      %1278 = vmatprep.subr.bf16.mxu0 0
      %1279 = vmatpush1.bf16.xpose.msra.mxu0 0
      %1280 = vmatprep.subr.bf16.mxu0 0
      %1281 = vmatpush1.bf16.xpose.msra.mxu0 0
      %1282 = vmatprep.subr.bf16.mxu0 0
      %1283 = vmatpush1.bf16.xpose.msra.mxu0 0
      %1284 = vmatprep.subr.bf16.mxu0 0
      %1285 = vmatpush1.bf16.xpose.msra.mxu0 0
      %1286 = vmatprep.subr.bf16.mxu0 0
      %1287 = vmatpush1.bf16.xpose.msra.mxu0 0
      %1288 = vmatprep.subr.bf16.mxu0 0
      %1289 = vmatpush1.bf16.xpose.msra.mxu0 0
      %1290 = vmatprep.subr.bf16.mxu0 0
      %1291 = vmatpush1.bf16.xpose.msra.mxu0 0
      %1292 = vmatprep.subr.bf16.mxu0 0
      %1293 = vmatpush1.bf16.xpose.msra.mxu0 0
      %1294 = vmatprep.subr.bf16.mxu0 0
      %1295 = vmatpush1.bf16.xpose.msra.mxu0 0
      %1296 = vmatprep.subr.bf16.mxu0 0
      %1297 = vmatpush1.bf16.xpose.msra.mxu0 0
      %1298 = vmatprep.subr.bf16.mxu0 0
      %1299 = vmatpush1.bf16.xpose.msra.mxu0 0
      %1300 = vmatprep.subr.bf16.mxu0 0
      %1301 = vmatpush1.bf16.xpose.msra.mxu0 0
      %1302 = vmatprep.subr.bf16.mxu0 0
      %1303 = vmatpush1.bf16.xpose.msra.mxu0 0
      %1304 = vmatprep.mubr.bf16.mxu0 0
      %1305 = vmatmul.mubr.bf16.gmra.mrb[0].mxu0 %v1267
      %v1306 = vpop.f32.mrb[0].mxu0
      %v1307 = vadd.f32 %v370, %v1306
      %v1308 = vpop.f32.mrb[0].mxu0
      %v1309 = vpop.f32.mrb[0].mxu0
      %v1310 = vpop.f32.mrb[0].mxu0
      %1311 = vdwg.mxu0
      %v1312 = vsel %vm375, %v1307, -inf
      %1313 = vmax.xlane.f32.xlu0 %v1312
      %v1314 = vpop.xlane.xlu0 %1313
      %v1315 = vsub.f32 %v1307, %v1314
      %v1316 = vmul.f32 %v1315, 1.442695
      %v1317 = vpow.pop %v1316
      %v1318 = vsel %vm375, %v1317, 0.0
      %1319 = vadd.xlane.f32.xlu0 %v1318
      %v1320 = vpop.xlane.xlu0 %1319
      %v1321 = vrcp.pop %v1320
      %v1322 = vmul.f32 %v1317, %v1321
      %v1323 = vpack.c.bf16 %v1322, %v1322
      %1324 = vrot.lane.b32.xlu0 %v1152, 56
      %v1325 = vpop.permute.xlu0 %1324
      %v1327 = vsel %vm375, %v1323, 0
      %v1330 = vsel %vm439, %v1325, 0
      %1332 = vmatprep.subr.bf16.mxu0 0
      %1333 = vmatpush1.bf16.msra.mxu0 %v1330
      %1334 = vmatprep.subr.bf16.mxu0 0
      %1335 = vmatpush1.bf16.msra.mxu0 0
      %1336 = vmatprep.subr.bf16.mxu0 0
      %1337 = vmatpush1.bf16.msra.mxu0 0
      %1338 = vmatprep.subr.bf16.mxu0 0
      %1339 = vmatpush1.bf16.msra.mxu0 0
      %1340 = vmatprep.subr.bf16.mxu0 0
      %1341 = vmatpush1.bf16.msra.mxu0 0
      %1342 = vmatprep.subr.bf16.mxu0 0
      %1343 = vmatpush1.bf16.msra.mxu0 0
      %1344 = vmatprep.subr.bf16.mxu0 0
      %1345 = vmatpush1.bf16.msra.mxu0 0
      %1346 = vmatprep.subr.bf16.mxu0 0
      %1347 = vmatpush1.bf16.msra.mxu0 0
      %1348 = vmatprep.subr.bf16.mxu0 0
      %1349 = vmatpush1.bf16.msra.mxu0 0
      %1350 = vmatprep.subr.bf16.mxu0 0
      %1351 = vmatpush1.bf16.msra.mxu0 0
      %1352 = vmatprep.subr.bf16.mxu0 0
      %1353 = vmatpush1.bf16.msra.mxu0 0
      %1354 = vmatprep.subr.bf16.mxu0 0
      %1355 = vmatpush1.bf16.msra.mxu0 0
      %1356 = vmatprep.subr.bf16.mxu0 0
      %1357 = vmatpush1.bf16.msra.mxu0 0
      %1358 = vmatprep.subr.bf16.mxu0 0
      %1359 = vmatpush1.bf16.msra.mxu0 0
      %1360 = vmatprep.subr.bf16.mxu0 0
      %1361 = vmatpush1.bf16.msra.mxu0 0
      %1362 = vmatprep.subr.bf16.mxu0 0
      %1363 = vmatpush1.bf16.msra.mxu0 0
      %1364 = vmatprep.mubr.bf16.mxu0 0
      %1365 = vmatmul.mubr.bf16.gmra.mrb[0].mxu0 %v1327
      %v1366 = vpop.f32.mrb[0].mxu0
      %v1367 = vadd.f32 0.0, %v1366
      %v1368 = vpop.f32.mrb[0].mxu0
      %v1369 = vpop.f32.mrb[0].mxu0
      %v1370 = vpop.f32.mrb[0].mxu0
      %1371 = vdwg.mxu0
      %1372 = vrot.lane.b32.xlu0 %v1152, 112
      %v1373 = vpop.permute.xlu0 %1372
      %1374 = vrot.lane.b32.xlu0 %v1152, 80
      %v1375 = vpop.permute.xlu0 %1374
      %v1377 = vsel %vm375, %v1373, 0
      %v1380 = vsel %vm375, %v1375, 0
      %1382 = vmatprep.subr.bf16.mxu0 0
      %1383 = vmatpush1.bf16.xpose.msra.mxu0 %v1380
      %1384 = vmatprep.subr.bf16.mxu0 0
      %1385 = vmatpush1.bf16.xpose.msra.mxu0 0
      %1386 = vmatprep.subr.bf16.mxu0 0
      %1387 = vmatpush1.bf16.xpose.msra.mxu0 0
      %1388 = vmatprep.subr.bf16.mxu0 0
      %1389 = vmatpush1.bf16.xpose.msra.mxu0 0
      %1390 = vmatprep.subr.bf16.mxu0 0
      %1391 = vmatpush1.bf16.xpose.msra.mxu0 0
      %1392 = vmatprep.subr.bf16.mxu0 0
      %1393 = vmatpush1.bf16.xpose.msra.mxu0 0
      %1394 = vmatprep.subr.bf16.mxu0 0
      %1395 = vmatpush1.bf16.xpose.msra.mxu0 0
      %1396 = vmatprep.subr.bf16.mxu0 0
      %1397 = vmatpush1.bf16.xpose.msra.mxu0 0
      %1398 = vmatprep.subr.bf16.mxu0 0
      %1399 = vmatpush1.bf16.xpose.msra.mxu0 0
      %1400 = vmatprep.subr.bf16.mxu0 0
      %1401 = vmatpush1.bf16.xpose.msra.mxu0 0
      %1402 = vmatprep.subr.bf16.mxu0 0
      %1403 = vmatpush1.bf16.xpose.msra.mxu0 0
      %1404 = vmatprep.subr.bf16.mxu0 0
      %1405 = vmatpush1.bf16.xpose.msra.mxu0 0
      %1406 = vmatprep.subr.bf16.mxu0 0
      %1407 = vmatpush1.bf16.xpose.msra.mxu0 0
      %1408 = vmatprep.subr.bf16.mxu0 0
      %1409 = vmatpush1.bf16.xpose.msra.mxu0 0
      %1410 = vmatprep.subr.bf16.mxu0 0
      %1411 = vmatpush1.bf16.xpose.msra.mxu0 0
      %1412 = vmatprep.subr.bf16.mxu0 0
      %1413 = vmatpush1.bf16.xpose.msra.mxu0 0
      %1414 = vmatprep.mubr.bf16.mxu0 0
      %1415 = vmatmul.mubr.bf16.gmra.mrb[0].mxu0 %v1377
      %v1416 = vpop.f32.mrb[0].mxu0
      %v1417 = vadd.f32 %v370, %v1416
      %v1418 = vpop.f32.mrb[0].mxu0
      %v1419 = vpop.f32.mrb[0].mxu0
      %v1420 = vpop.f32.mrb[0].mxu0
      %1421 = vdwg.mxu0
      %v1422 = vsel %vm375, %v1417, -inf
      %1423 = vmax.xlane.f32.xlu0 %v1422
      %v1424 = vpop.xlane.xlu0 %1423
      %v1425 = vsub.f32 %v1417, %v1424
      %v1426 = vmul.f32 %v1425, 1.442695
      %v1427 = vpow.pop %v1426
      %v1428 = vsel %vm375, %v1427, 0.0
      %1429 = vadd.xlane.f32.xlu0 %v1428
      %v1430 = vpop.xlane.xlu0 %1429
      %v1431 = vrcp.pop %v1430
      %v1432 = vmul.f32 %v1427, %v1431
      %v1433 = vpack.c.bf16 %v1432, %v1432
      %1434 = vrot.lane.b32.xlu0 %v1152, 48
      %v1435 = vpop.permute.xlu0 %1434
      %v1437 = vsel %vm375, %v1433, 0
      %v1440 = vsel %vm439, %v1435, 0
      %1442 = vmatprep.subr.bf16.mxu0 0
      %1443 = vmatpush1.bf16.msra.mxu0 %v1440
      %1444 = vmatprep.subr.bf16.mxu0 0
      %1445 = vmatpush1.bf16.msra.mxu0 0
      %1446 = vmatprep.subr.bf16.mxu0 0
      %1447 = vmatpush1.bf16.msra.mxu0 0
      %1448 = vmatprep.subr.bf16.mxu0 0
      %1449 = vmatpush1.bf16.msra.mxu0 0
      %1450 = vmatprep.subr.bf16.mxu0 0
      %1451 = vmatpush1.bf16.msra.mxu0 0
      %1452 = vmatprep.subr.bf16.mxu0 0
      %1453 = vmatpush1.bf16.msra.mxu0 0
      %1454 = vmatprep.subr.bf16.mxu0 0
      %1455 = vmatpush1.bf16.msra.mxu0 0
      %1456 = vmatprep.subr.bf16.mxu0 0
      %1457 = vmatpush1.bf16.msra.mxu0 0
      %1458 = vmatprep.subr.bf16.mxu0 0
      %1459 = vmatpush1.bf16.msra.mxu0 0
      %1460 = vmatprep.subr.bf16.mxu0 0
      %1461 = vmatpush1.bf16.msra.mxu0 0
      %1462 = vmatprep.subr.bf16.mxu0 0
      %1463 = vmatpush1.bf16.msra.mxu0 0
      %1464 = vmatprep.subr.bf16.mxu0 0
      %1465 = vmatpush1.bf16.msra.mxu0 0
      %1466 = vmatprep.subr.bf16.mxu0 0
      %1467 = vmatpush1.bf16.msra.mxu0 0
      %1468 = vmatprep.subr.bf16.mxu0 0
      %1469 = vmatpush1.bf16.msra.mxu0 0
      %1470 = vmatprep.subr.bf16.mxu0 0
      %1471 = vmatpush1.bf16.msra.mxu0 0
      %1472 = vmatprep.subr.bf16.mxu0 0
      %1473 = vmatpush1.bf16.msra.mxu0 0
      %1474 = vmatprep.mubr.bf16.mxu0 0
      %1475 = vmatmul.mubr.bf16.gmra.mrb[0].mxu0 %v1437
      %v1476 = vpop.f32.mrb[0].mxu0
      %v1477 = vadd.f32 0.0, %v1476
      %v1478 = vpop.f32.mrb[0].mxu0
      %v1479 = vpop.f32.mrb[0].mxu0
      %v1480 = vpop.f32.mrb[0].mxu0
      %1481 = vdwg.mxu0
      %1482 = vrot.lane.b32.xlu0 %v1152, 104
      %v1483 = vpop.permute.xlu0 %1482
      %1484 = vrot.lane.b32.xlu0 %v1152, 72
      %v1485 = vpop.permute.xlu0 %1484
      %v1487 = vsel %vm375, %v1483, 0
      %v1490 = vsel %vm375, %v1485, 0
      %1492 = vmatprep.subr.bf16.mxu0 0
      %1493 = vmatpush1.bf16.xpose.msra.mxu0 %v1490
      %1494 = vmatprep.subr.bf16.mxu0 0
      %1495 = vmatpush1.bf16.xpose.msra.mxu0 0
      %1496 = vmatprep.subr.bf16.mxu0 0
      %1497 = vmatpush1.bf16.xpose.msra.mxu0 0
      %1498 = vmatprep.subr.bf16.mxu0 0
      %1499 = vmatpush1.bf16.xpose.msra.mxu0 0
      %1500 = vmatprep.subr.bf16.mxu0 0
      %1501 = vmatpush1.bf16.xpose.msra.mxu0 0
      %1502 = vmatprep.subr.bf16.mxu0 0
      %1503 = vmatpush1.bf16.xpose.msra.mxu0 0
      %1504 = vmatprep.subr.bf16.mxu0 0
      %1505 = vmatpush1.bf16.xpose.msra.mxu0 0
      %1506 = vmatprep.subr.bf16.mxu0 0
      %1507 = vmatpush1.bf16.xpose.msra.mxu0 0
      %1508 = vmatprep.subr.bf16.mxu0 0
      %1509 = vmatpush1.bf16.xpose.msra.mxu0 0
      %1510 = vmatprep.subr.bf16.mxu0 0
      %1511 = vmatpush1.bf16.xpose.msra.mxu0 0
      %1512 = vmatprep.subr.bf16.mxu0 0
      %1513 = vmatpush1.bf16.xpose.msra.mxu0 0
      %1514 = vmatprep.subr.bf16.mxu0 0
      %1515 = vmatpush1.bf16.xpose.msra.mxu0 0
      %1516 = vmatprep.subr.bf16.mxu0 0
      %1517 = vmatpush1.bf16.xpose.msra.mxu0 0
      %1518 = vmatprep.subr.bf16.mxu0 0
      %1519 = vmatpush1.bf16.xpose.msra.mxu0 0
      %1520 = vmatprep.subr.bf16.mxu0 0
      %1521 = vmatpush1.bf16.xpose.msra.mxu0 0
      %1522 = vmatprep.subr.bf16.mxu0 0
      %1523 = vmatpush1.bf16.xpose.msra.mxu0 0
      %1524 = vmatprep.mubr.bf16.mxu0 0
      %1525 = vmatmul.mubr.bf16.gmra.mrb[0].mxu0 %v1487
      %v1526 = vpop.f32.mrb[0].mxu0
      %v1527 = vadd.f32 %v370, %v1526
      %v1528 = vpop.f32.mrb[0].mxu0
      %v1529 = vpop.f32.mrb[0].mxu0
      %v1530 = vpop.f32.mrb[0].mxu0
      %1531 = vdwg.mxu0
      %v1532 = vsel %vm375, %v1527, -inf
      %1533 = vmax.xlane.f32.xlu0 %v1532
      %v1534 = vpop.xlane.xlu0 %1533
      %v1535 = vsub.f32 %v1527, %v1534
      %v1536 = vmul.f32 %v1535, 1.442695
      %v1537 = vpow.pop %v1536
      %v1538 = vsel %vm375, %v1537, 0.0
      %1539 = vadd.xlane.f32.xlu0 %v1538
      %v1540 = vpop.xlane.xlu0 %1539
      %v1541 = vrcp.pop %v1540
      %v1542 = vmul.f32 %v1537, %v1541
      %v1543 = vpack.c.bf16 %v1542, %v1542
      %1544 = vrot.lane.b32.xlu0 %v1152, 40
      %v1545 = vpop.permute.xlu0 %1544
      %v1547 = vsel %vm375, %v1543, 0
      %v1550 = vsel %vm439, %v1545, 0
      %1552 = vmatprep.subr.bf16.mxu0 0
      %1553 = vmatpush1.bf16.msra.mxu0 %v1550
      %1554 = vmatprep.subr.bf16.mxu0 0
      %1555 = vmatpush1.bf16.msra.mxu0 0
      %1556 = vmatprep.subr.bf16.mxu0 0
      %1557 = vmatpush1.bf16.msra.mxu0 0
      %1558 = vmatprep.subr.bf16.mxu0 0
      %1559 = vmatpush1.bf16.msra.mxu0 0
      %1560 = vmatprep.subr.bf16.mxu0 0
      %1561 = vmatpush1.bf16.msra.mxu0 0
      %1562 = vmatprep.subr.bf16.mxu0 0
      %1563 = vmatpush1.bf16.msra.mxu0 0
      %1564 = vmatprep.subr.bf16.mxu0 0
      %1565 = vmatpush1.bf16.msra.mxu0 0
      %1566 = vmatprep.subr.bf16.mxu0 0
      %1567 = vmatpush1.bf16.msra.mxu0 0
      %1568 = vmatprep.subr.bf16.mxu0 0
      %1569 = vmatpush1.bf16.msra.mxu0 0
      %1570 = vmatprep.subr.bf16.mxu0 0
      %1571 = vmatpush1.bf16.msra.mxu0 0
      %1572 = vmatprep.subr.bf16.mxu0 0
      %1573 = vmatpush1.bf16.msra.mxu0 0
      %1574 = vmatprep.subr.bf16.mxu0 0
      %1575 = vmatpush1.bf16.msra.mxu0 0
      %1576 = vmatprep.subr.bf16.mxu0 0
      %1577 = vmatpush1.bf16.msra.mxu0 0
      %1578 = vmatprep.subr.bf16.mxu0 0
      %1579 = vmatpush1.bf16.msra.mxu0 0
      %1580 = vmatprep.subr.bf16.mxu0 0
      %1581 = vmatpush1.bf16.msra.mxu0 0
      %1582 = vmatprep.subr.bf16.mxu0 0
      %1583 = vmatpush1.bf16.msra.mxu0 0
      %1584 = vmatprep.mubr.bf16.mxu0 0
      %1585 = vmatmul.mubr.bf16.gmra.mrb[0].mxu0 %v1547
      %v1586 = vpop.f32.mrb[0].mxu0
      %v1587 = vadd.f32 0.0, %v1586
      %v1588 = vpop.f32.mrb[0].mxu0
      %v1589 = vpop.f32.mrb[0].mxu0
      %v1590 = vpop.f32.mrb[0].mxu0
      %1591 = vdwg.mxu0
      %1593 = vrot.lane.b32.xlu0 %v1367, 8
      %v1594 = vpop.permute.xlu0 %1593
      %1597 = vrot.lane.b32.xlu0 %v1477, 16
      %v1598 = vpop.permute.xlu0 %1597
      %1601 = vrot.lane.b32.xlu0 %v1587, 24
      %v1602 = vpop.permute.xlu0 %1601
      %v1604 = vsel %vm375, %v1257, %v1594
      %v1605 = vsel %vm826, %v1604, %v1598
      %v1606 = vsel %vm828, %v1605, %v1602
      %v1607 = vpack.c.bf16 %v1606, %v1606
      %v1608 = vld [vmem:[%s2 + $0xb] sm:$0x1]
      %v1609 = vlaneseq
      %v1610 = vshrl.u32 %v1609, 7
      %v1611 = vsub.s32 0, %v1610
      %v1612 = vrot.slane %v1608, %v1611
      %1613 = vrot.lane.b32.xlu0 %v1105, 32
      %v1614 = vpop.permute.xlu0 %1613
      %1615 = vrot.lane.b32.xlu0 %v1106, 32
      %v1616 = vpop.permute.xlu0 %1615
      %v1620 = vsel %vm265, %v1607, 0
      %1622 = vmatprep.subr.bf16.mxu0 0
      %1623 = vmatpush1.bf16.msra.mxu0 %v1614
      %1624 = vmatprep.subr.bf16.mxu0 0
      %1625 = vmatpush1.bf16.msra.mxu0 %v1616
      %1626 = vmatprep.subr.bf16.mxu0 0
      %1627 = vmatpush1.bf16.msra.mxu0 0
      %1628 = vmatprep.subr.bf16.mxu0 0
      %1629 = vmatpush1.bf16.msra.mxu0 0
      %1630 = vmatprep.subr.bf16.mxu0 0
      %1631 = vmatpush1.bf16.msra.mxu0 0
      %1632 = vmatprep.subr.bf16.mxu0 0
      %1633 = vmatpush1.bf16.msra.mxu0 0
      %1634 = vmatprep.subr.bf16.mxu0 0
      %1635 = vmatpush1.bf16.msra.mxu0 0
      %1636 = vmatprep.subr.bf16.mxu0 0
      %1637 = vmatpush1.bf16.msra.mxu0 0
      %1638 = vmatprep.subr.bf16.mxu0 0
      %1639 = vmatpush1.bf16.msra.mxu0 0
      %1640 = vmatprep.subr.bf16.mxu0 0
      %1641 = vmatpush1.bf16.msra.mxu0 0
      %1642 = vmatprep.subr.bf16.mxu0 0
      %1643 = vmatpush1.bf16.msra.mxu0 0
      %1644 = vmatprep.subr.bf16.mxu0 0
      %1645 = vmatpush1.bf16.msra.mxu0 0
      %1646 = vmatprep.subr.bf16.mxu0 0
      %1647 = vmatpush1.bf16.msra.mxu0 0
      %1648 = vmatprep.subr.bf16.mxu0 0
      %1649 = vmatpush1.bf16.msra.mxu0 0
      %1650 = vmatprep.subr.bf16.mxu0 0
      %1651 = vmatpush1.bf16.msra.mxu0 0
      %1652 = vmatprep.subr.bf16.mxu0 0
      %1653 = vmatpush1.bf16.msra.mxu0 0
      %1654 = vmatprep.mubr.bf16.mxu0 0
      %1655 = vmatmul.mubr.bf16.gmra.mrb[0].mxu0 %v1620
      %v1656 = vpop.f32.mrb[0].mxu0
      %v1657 = vadd.f32 %v1612, %v1656
      %v1658 = vpop.f32.mrb[0].mxu0
      %v1659 = vpop.f32.mrb[0].mxu0
      %v1660 = vpop.f32.mrb[0].mxu0
      %1661 = vdwg.mxu0
      %v1662 = vadd.f32 %v1076, %v1657
      %v1663 = vsel %vm265, %v1662, 0.0
      %1664 = vadd.xlane.f32.xlu0 %v1663
      %v1665 = vpop.xlane.xlu0 %1664
      %v1666 = vmul.f32 %v1665, %v269
      %v1667 = vsub.f32 %v1662, %v1666
      %v1668 = vmul.f32 %v1667, %v1667
      %v1669 = vsel %vm265, %v1668, 0.0
      %1670 = vadd.xlane.f32.xlu0 %v1669
      %v1671 = vpop.xlane.xlu0 %1670
      %v1672 = vmul.f32 %v1671, %v269
      %v1673 = vadd.f32 %v1672, 1e-05
      %v1674 = vrsqrt.pop %v1673
      %v1675 = vmul.f32 %v1667, %v1674
      %v1676 = vld [vmem:[%s2 + $0xc] sm:$0x1]
      %v1677 = vlaneseq
      %v1678 = vshrl.u32 %v1677, 7
      %v1679 = vsub.s32 0, %v1678
      %v1680 = vrot.slane %v1676, %v1679
      %v1681 = vmul.f32 %v1675, %v1680
      %v1682 = vld [vmem:[%s2 + $0xd] sm:$0x1]
      %v1683 = vlaneseq
      %v1684 = vshrl.u32 %v1683, 7
      %v1685 = vsub.s32 0, %v1684
      %v1686 = vrot.slane %v1682, %v1685
      %v1687 = vadd.f32 %v1681, %v1686
      %v1688 = vpack.c.bf16 %v1687, %v1687
      %v1689 = vld [vmem:[%s2 + $0xe] sm:$0x1]
      %v1690 = vlaneseq
      %v1691 = vshrl.u32 %v1690, 7
      %v1692 = vsub.s32 0, %v1691
      %v1693 = vrot.slane %v1689, %v1692
      %v1694 = vunpack.c.h.b16 %v1078
      %v1695 = vunpack.c.h.b16 %v1079
      %v1696 = vunpack.c.h.b16 %v1080
      %v1697 = vunpack.c.h.b16 %v1081
      %v1698 = vpack.c.b16 %v1695, %v1694
      %v1699 = vpack.c.b16 %v1697, %v1696
      %v1703 = vsel %vm265, %v1688, 0
      %1705 = vmatprep.subr.bf16.mxu0 0
      %1706 = vmatpush1.bf16.msra.mxu0 %v1698
      %1707 = vmatprep.subr.bf16.mxu0 0
      %1708 = vmatpush1.bf16.msra.mxu0 %v1699
      %1709 = vmatprep.subr.bf16.mxu0 0
      %1710 = vmatpush1.bf16.msra.mxu0 0
      %1711 = vmatprep.subr.bf16.mxu0 0
      %1712 = vmatpush1.bf16.msra.mxu0 0
      %1713 = vmatprep.subr.bf16.mxu0 0
      %1714 = vmatpush1.bf16.msra.mxu0 0
      %1715 = vmatprep.subr.bf16.mxu0 0
      %1716 = vmatpush1.bf16.msra.mxu0 0
      %1717 = vmatprep.subr.bf16.mxu0 0
      %1718 = vmatpush1.bf16.msra.mxu0 0
      %1719 = vmatprep.subr.bf16.mxu0 0
      %1720 = vmatpush1.bf16.msra.mxu0 0
      %1721 = vmatprep.subr.bf16.mxu0 0
      %1722 = vmatpush1.bf16.msra.mxu0 0
      %1723 = vmatprep.subr.bf16.mxu0 0
      %1724 = vmatpush1.bf16.msra.mxu0 0
      %1725 = vmatprep.subr.bf16.mxu0 0
      %1726 = vmatpush1.bf16.msra.mxu0 0
      %1727 = vmatprep.subr.bf16.mxu0 0
      %1728 = vmatpush1.bf16.msra.mxu0 0
      %1729 = vmatprep.subr.bf16.mxu0 0
      %1730 = vmatpush1.bf16.msra.mxu0 0
      %1731 = vmatprep.subr.bf16.mxu0 0
      %1732 = vmatpush1.bf16.msra.mxu0 0
      %1733 = vmatprep.subr.bf16.mxu0 0
      %1734 = vmatpush1.bf16.msra.mxu0 0
      %1735 = vmatprep.subr.bf16.mxu0 0
      %1736 = vmatpush1.bf16.msra.mxu0 0
      %1737 = vmatprep.mubr.bf16.mxu0 0
      %1738 = vmatmul.mubr.bf16.gmra.mrb[0].mxu0 %v1703
      %v1739 = vpop.f32.mrb[0].mxu0
      %v1740 = vadd.f32 %v1693, %v1739
      %v1741 = vpop.f32.mrb[0].mxu0
      %v1742 = vpop.f32.mrb[0].mxu0
      %v1743 = vpop.f32.mrb[0].mxu0
      %1744 = vdwg.mxu0
      %v1745 = vmul.f32 %v1740, 0.5
      %v1746 = vmul.f32 %v1740, 0.044715
      %v1747 = vmul.f32 %v1746, %v1740
      %v1748 = vmul.f32 %v1747, %v1740
      %v1749 = vadd.f32 %v1740, %v1748
      %v1750 = vmul.f32 %v1749, 0.7978846
      %v1751 = vtanh.pop %v1750
      %v1752 = vadd.f32 %v1751, 1.0
      %v1753 = vmul.f32 %v1745, %v1752
      %v1754 = vpack.c.bf16 %v1753, %v1753
      %v1755 = vld [vmem:[%s2 + $0xf] sm:$0x1]
      %v1756 = vlaneseq
      %v1757 = vshrl.u32 %v1756, 7
      %v1758 = vsub.s32 0, %v1757
      %v1759 = vrot.slane %v1755, %v1758
      %v1768 = vunpack.c.l.b16 %v1083
      %v1769 = vunpack.c.l.b16 %v1084
      %v1770 = vunpack.c.l.b16 %v1085
      %v1771 = vunpack.c.l.b16 %v1086
      %v1772 = vunpack.c.l.b16 %v1087
      %v1773 = vunpack.c.l.b16 %v1088
      %v1774 = vunpack.c.l.b16 %v1089
      %v1775 = vunpack.c.l.b16 %v1090
      %v1776 = vpack.c.b16 %v1769, %v1768
      %v1777 = vpack.c.b16 %v1771, %v1770
      %v1778 = vpack.c.b16 %v1773, %v1772
      %v1779 = vpack.c.b16 %v1775, %v1774
      %v1785 = vsel %vm1007, %v1754, 0
      %1787 = vmatprep.subr.bf16.mxu0 0
      %1788 = vmatpush1.bf16.msra.mxu0 %v1776
      %1789 = vmatprep.subr.bf16.mxu0 0
      %1790 = vmatpush1.bf16.msra.mxu0 %v1777
      %1791 = vmatprep.subr.bf16.mxu0 0
      %1792 = vmatpush1.bf16.msra.mxu0 %v1778
      %1793 = vmatprep.subr.bf16.mxu0 0
      %1794 = vmatpush1.bf16.msra.mxu0 %v1779
      %1795 = vmatprep.subr.bf16.mxu0 0
      %1796 = vmatpush1.bf16.msra.mxu0 0
      %1797 = vmatprep.subr.bf16.mxu0 0
      %1798 = vmatpush1.bf16.msra.mxu0 0
      %1799 = vmatprep.subr.bf16.mxu0 0
      %1800 = vmatpush1.bf16.msra.mxu0 0
      %1801 = vmatprep.subr.bf16.mxu0 0
      %1802 = vmatpush1.bf16.msra.mxu0 0
      %1803 = vmatprep.subr.bf16.mxu0 0
      %1804 = vmatpush1.bf16.msra.mxu0 0
      %1805 = vmatprep.subr.bf16.mxu0 0
      %1806 = vmatpush1.bf16.msra.mxu0 0
      %1807 = vmatprep.subr.bf16.mxu0 0
      %1808 = vmatpush1.bf16.msra.mxu0 0
      %1809 = vmatprep.subr.bf16.mxu0 0
      %1810 = vmatpush1.bf16.msra.mxu0 0
      %1811 = vmatprep.subr.bf16.mxu0 0
      %1812 = vmatpush1.bf16.msra.mxu0 0
      %1813 = vmatprep.subr.bf16.mxu0 0
      %1814 = vmatpush1.bf16.msra.mxu0 0
      %1815 = vmatprep.subr.bf16.mxu0 0
      %1816 = vmatpush1.bf16.msra.mxu0 0
      %1817 = vmatprep.subr.bf16.mxu0 0
      %1818 = vmatpush1.bf16.msra.mxu0 0
      %1819 = vmatprep.mubr.bf16.mxu0 0
      %1820 = vmatmul.mubr.bf16.gmra.mrb[0].mxu0 %v1785
      %v1821 = vpop.f32.mrb[0].mxu0
      %v1822 = vadd.f32 %v1759, %v1821
      %v1823 = vpop.f32.mrb[0].mxu0
      %v1824 = vpop.f32.mrb[0].mxu0
      %v1825 = vpop.f32.mrb[0].mxu0
      %1826 = vdwg.mxu0
      %v1827 = vadd.f32 %v1687, %v1822
      %v1828 = vsel %vm265, %v1827, 0.0
      %1829 = vadd.xlane.f32.xlu0 %v1828
      %v1830 = vpop.xlane.xlu0 %1829
      %v1831 = vmul.f32 %v1830, %v269
      %v1832 = vsub.f32 %v1827, %v1831
      %v1833 = vmul.f32 %v1832, %v1832
      %v1834 = vsel %vm265, %v1833, 0.0
      %1835 = vadd.xlane.f32.xlu0 %v1834
      %v1836 = vpop.xlane.xlu0 %1835
      %v1837 = vmul.f32 %v1836, %v269
      %v1838 = vadd.f32 %v1837, 1e-05
      %v1839 = vrsqrt.pop %v1838
      %v1840 = vmul.f32 %v1832, %v1839
      %v1841 = vld [vmem:[%s2 + $0x10] sm:$0x1]
      %v1842 = vlaneseq
      %v1843 = vshrl.u32 %v1842, 7
      %v1844 = vsub.s32 0, %v1843
      %v1845 = vrot.slane %v1841, %v1844
      %v1846 = vmul.f32 %v1840, %v1845
      %v1847 = vld [vmem:[%s2 + $0x11] sm:$0x1]
      %v1848 = vlaneseq
      %v1849 = vshrl.u32 %v1848, 7
      %v1850 = vsub.s32 0, %v1849
      %v1851 = vrot.slane %v1847, %v1850
      %v1852 = vadd.f32 %v1846, %v1851
      %v1853 = vpack.c.bf16 %v1852, %v1852
      %v1854 = vld [vmem:[%s5] sm:$0xf]
      %v1855 = vld [vmem:[%s5 + $0x4] sm:$0xf]
      %v1856 = vld [vmem:[%s5 + $0x8] sm:$0xf]
      %v1857 = vld [vmem:[%s5 + $0xc] sm:$0xf]
      %v1858 = vld [vmem:[%s2 + $0x12] sm:$0x1]
      %v1859 = vlaneseq
      %v1860 = vshrl.u32 %v1859, 7
      %v1861 = vsub.s32 0, %v1860
      %v1862 = vrot.slane %v1858, %v1861
      %v1867 = vunpack.c.l.b16 %v1854
      %v1868 = vunpack.c.l.b16 %v1855
      %v1869 = vunpack.c.l.b16 %v1856
      %v1870 = vunpack.c.l.b16 %v1857
      %v1871 = vpack.c.b16 %v1868, %v1867
      %v1872 = vpack.c.b16 %v1870, %v1869
      %v1876 = vsel %vm265, %v1853, 0
      %1878 = vmatprep.subr.bf16.mxu0 0
      %1879 = vmatpush1.bf16.msra.mxu0 %v1871
      %1880 = vmatprep.subr.bf16.mxu0 0
      %1881 = vmatpush1.bf16.msra.mxu0 %v1872
      %1882 = vmatprep.subr.bf16.mxu0 0
      %1883 = vmatpush1.bf16.msra.mxu0 0
      %1884 = vmatprep.subr.bf16.mxu0 0
      %1885 = vmatpush1.bf16.msra.mxu0 0
      %1886 = vmatprep.subr.bf16.mxu0 0
      %1887 = vmatpush1.bf16.msra.mxu0 0
      %1888 = vmatprep.subr.bf16.mxu0 0
      %1889 = vmatpush1.bf16.msra.mxu0 0
      %1890 = vmatprep.subr.bf16.mxu0 0
      %1891 = vmatpush1.bf16.msra.mxu0 0
      %1892 = vmatprep.subr.bf16.mxu0 0
      %1893 = vmatpush1.bf16.msra.mxu0 0
      %1894 = vmatprep.subr.bf16.mxu0 0
      %1895 = vmatpush1.bf16.msra.mxu0 0
      %1896 = vmatprep.subr.bf16.mxu0 0
      %1897 = vmatpush1.bf16.msra.mxu0 0
      %1898 = vmatprep.subr.bf16.mxu0 0
      %1899 = vmatpush1.bf16.msra.mxu0 0
      %1900 = vmatprep.subr.bf16.mxu0 0
      %1901 = vmatpush1.bf16.msra.mxu0 0
      %1902 = vmatprep.subr.bf16.mxu0 0
      %1903 = vmatpush1.bf16.msra.mxu0 0
      %1904 = vmatprep.subr.bf16.mxu0 0
      %1905 = vmatpush1.bf16.msra.mxu0 0
      %1906 = vmatprep.subr.bf16.mxu0 0
      %1907 = vmatpush1.bf16.msra.mxu0 0
      %1908 = vmatprep.subr.bf16.mxu0 0
      %1909 = vmatpush1.bf16.msra.mxu0 0
      %1910 = vmatprep.mubr.bf16.mxu0 0
      %1911 = vmatmul.mubr.bf16.gmra.mrb[0].mxu0 %v1876
      %v1912 = vpop.f32.mrb[0].mxu0
      %v1913 = vadd.f32 %v1862, %v1912
      %v1914 = vpop.f32.mrb[0].mxu0
      %v1915 = vpop.f32.mrb[0].mxu0
      %v1916 = vpop.f32.mrb[0].mxu0
      %1917 = vdwg.mxu0
      %1918 = vst [vmem:[%s260] sm:$0xff] %v1913
      %p1919 = scmp.lt.s32.totalorder %s17, 1
      %s1920 = scalar_select %p1919, %s17, 1
      %s1921 = smul.addr %s1920, 8
      %s1922 = scalar_lea.vmem %s6, %s1921
      // Predicated region
      $region45: #{echr_forward.1} parent=43 // pred_check
        %p1923 = pneg %p171
      $region46: #{echr_forward.1} parent=43 // pred_check_branch
        %1925 = sbr.rel (%p1923) target = $region48
      $region47: #{echr_forward.1} parent=43 // pred_region
        _
      $region48: #{echr_forward.1} parent=43 // pred_fallthru
        _
    $region44: #{echr_forward.1} parent=5 // pred_fallthru
      _
    %p1926 = scmp.le.s32.totalorder 2, %s12
    // Predicated region
    $region49: #{echr_forward.1} parent=5 // pred_check
      %p1927 = pneg %p1926
    $region50: #{echr_forward.1} parent=5 // pred_check_branch
      %1929 = sbr.rel (%p1927) target = $region52
    $region51: #{echr_forward.1} parent=5 // pred_region
      %s1930 = ssub.s32 %s12, 2
      // Predicated region
      $region53: #{echr_forward.1} parent=51 // pred_check
        %p1931 = pneg %p177
      $region54: #{echr_forward.1} parent=51 // pred_check_branch
        %1933 = sbr.rel (%p1931) target = $region56
      $region55: #{echr_forward.1} parent=51 // pred_region
        %p1934 = scmp.lt.s32.totalorder %s18, 1
        %s1935 = scalar_select %p1934, %s18, 1
        %s1936 = smul.addr %s1935, 8
        %s1937 = scalar_lea.vmem %s6, %s1936
      $region56: #{echr_forward.1} parent=51 // pred_fallthru
        _
    $region52: #{echr_forward.1} parent=5 // pred_fallthru
      _
  $region6: #{echr_forward.1} parent=0 // loop_footer
    %s16 = sadd.s32 1, %s12
  $region7: #{echr_forward.1} parent=0 // loop_footer_branch
    %11 = sbr.rel target = $region3
  $region8: #{echr_forward.1} parent=0 // loop_exit
    _

</llo_original>
